<compile_context>
chip_gen: v6e
topology: v6e:2x2x1
jax: 0.10.0
libtpu: 0.0.40
codegen_flags: <defaults>
</compile_context>

<pallas_src>
import jax
import jax.numpy as jnp
from jax import lax
from jax.experimental import pallas as pl
from jax.experimental.pallas import tpu as pltpu

H = 32  # hidden size (fixed by the module)


def _lstm_fc_kernel(x_ref, wih0_ref, whh0_ref, b0_ref,
                    wih1_ref, whh1_ref, b1_ref, wfc_ref, bfc_ref, out_ref):
    T, B, _ = x_ref.shape

    # Recurrent weights (bf16 from the wrapper; MXU accumulates in f32).
    whh0 = whh0_ref[...]          # (H, 4H)  layer-0 recurrent
    wih1 = wih1_ref[...]          # (H, 4H)  layer-1 input
    whh1 = whh1_ref[...]          # (H, 4H)  layer-1 recurrent
    mxu_dtype = whh0.dtype

    # Precompute layer-0 input gates (+ bias) for every time step at once,
    # off the recurrent critical path:  (T, B, 1) * (1, 1, 4H) -> (T, B, 4H).
    g0_in = x_ref[...] * wih0_ref[...][None] + b0_ref[...][None]

    # Hoist the layer-1 bias broadcast out of the loop (JAX does not CSE it).
    b1b = jnp.broadcast_to(b1_ref[...], (B, 4 * H))

    def cell(gates, c_prev):
        # Gate order along the 4H axis is [i, f, o, g]:
        # one sigmoid over a contiguous (B, 3H), one tanh over (B, H).
        sig = jax.nn.sigmoid(gates[:, :3 * H])
        g = jnp.tanh(gates[:, 3 * H:])
        i = sig[:, 0 * H:1 * H]
        f = sig[:, 1 * H:2 * H]
        o = sig[:, 2 * H:3 * H]
        c_new = f * c_prev + i * g
        h_new = o * jnp.tanh(c_new)
        return h_new, c_new

    def step(g0_t, h1, c1, h2, c2):
        # Layer 0: precomputed input term + one bf16 recurrent matmul.
        gates0 = g0_t + jnp.dot(h1.astype(mxu_dtype), whh0,
                                preferred_element_type=jnp.float32)
        h1, c1 = cell(gates0, c1)
        # Layer 1: two matmuls accumulated in f32 — no per-step lane concat.
        gates1 = (jnp.dot(h1.astype(mxu_dtype), wih1,
                          preferred_element_type=jnp.float32)
                  + jnp.dot(h2.astype(mxu_dtype), whh1,
                            preferred_element_type=jnp.float32)
                  + b1b)
        h2, c2 = cell(gates1, c2)
        return h1, c1, h2, c2

    zeros = jnp.zeros((B, H), jnp.float32)        # h0 = c0 = 0
    h1 = c1 = h2 = c2 = zeros

    if T <= 16:
        # Small T: full static unroll so the LLO scheduler sees the whole
        # recurrence stream (live vregs stay well under 64 at T=8).
        for t in range(T):
            h1, c1, h2, c2 = step(g0_in[t], h1, c1, h2, c2)
    else:
        # Larger T: partial unroll bounds live ranges / vreg pressure while
        # keeping scheduler visibility (per performance review).
        def body(t, carry):
            h1, c1, h2, c2 = carry
            g0_t = lax.dynamic_index_in_dim(g0_in, t, axis=0, keepdims=False)
            return step(g0_t, h1, c1, h2, c2)
        h1, c1, h2, c2 = lax.fori_loop(0, T, body, (h1, c1, h2, c2), unroll=4)

    # fc on the last time step's layer-2 hidden state: VPU mul + lane reduce
    # (cheaper than an (B,H)@(H,1) MXU matmul for a single output column).
    out_ref[...] = (jnp.sum(h2 * wfc_ref[...], axis=-1, keepdims=True)
                    + bfc_ref[...])


def _reorder_gates(w):
    """Permute PyTorch gate order [i, f, g, o] -> kernel order [i, f, o, g]."""
    i = w[..., 0 * H:1 * H]
    f = w[..., 1 * H:2 * H]
    g = w[..., 2 * H:3 * H]
    o = w[..., 3 * H:4 * H]
    return jnp.concatenate([i, f, o, g], axis=-1)


def net_forward(x, params, *, mxu_dtype=jnp.bfloat16):
    """x: (B, T, 1) float32 -> (B, 1) float32 (matches PyTorch Net.forward)."""
    B, T, _ = x.shape
    (wih0, whh0, b0, wih1, whh1, b1, wfc, bfc) = params

    # Gate-column reorder so sigmoid gates are contiguous and tanh gate is last.
    wih0p, whh0p, b0p = (_reorder_gates(wih0), _reorder_gates(whh0),
                         _reorder_gates(b0))
    wih1p, whh1p, b1p = (_reorder_gates(wih1), _reorder_gates(whh1),
                         _reorder_gates(b1))
    # bf16 operands for the MXU (f32 accumulation inside the kernel); the
    # layer-0 input weight stays f32 (it is used only in a VPU elementwise op).
    whh0m = whh0p.astype(mxu_dtype)
    wih1m = wih1p.astype(mxu_dtype)
    whh1m = whh1p.astype(mxu_dtype)
    # fc weight as a (1, H) row for the VPU-mul + lane-reduce epilogue.
    wfc_row = wfc.reshape(1, H)
    # Time-major x so the kernel indexes the leading (sublane-major) axis.
    xt = jnp.transpose(x, (1, 0, 2))              # (T, B, 1)

    vmem = pl.BlockSpec(memory_space=pltpu.MemorySpace.VMEM)
    return pl.pallas_call(
        _lstm_fc_kernel,
        out_shape=jax.ShapeDtypeStruct((B, 1), jnp.float32),
        in_specs=[vmem] * 9,
        out_specs=vmem,
    )(xt, wih0p, whh0m, b0p, wih1m, whh1m, b1p, wfc_row, bfc)


def init_params(key):
    """Deterministic params, same shapes/init range as PyTorch nn.LSTM/Linear.

    Stored in PyTorch gate order [i, f, g, o]; the kernel wrapper permutes.
    """
    k = 1.0 / jnp.sqrt(jnp.float32(H))
    keys = jax.random.split(key, 12)
    u = lambda kk, shape: jax.random.uniform(kk, shape, jnp.float32, -k, k)

    # Layer 0 (PyTorch shapes: w_ih (4H,1), w_hh (4H,H)) -> transposed.
    wih0 = u(keys[0], (4 * H, 1)).T                       # (1, 4H)
    whh0 = u(keys[1], (4 * H, H)).T                       # (H, 4H)
    b0 = (u(keys[2], (4 * H,)) + u(keys[3], (4 * H,))).reshape(1, 4 * H)
    # Layer 1 (w_ih (4H,H), w_hh (4H,H)) -> transposed.
    wih1 = u(keys[4], (4 * H, H)).T                       # (H, 4H)
    whh1 = u(keys[5], (4 * H, H)).T                       # (H, 4H)
    b1 = (u(keys[6], (4 * H,)) + u(keys[7], (4 * H,))).reshape(1, 4 * H)
    # fc: Linear(32, 1): weight (1, 32), bias (1,) -> transposed.
    wfc = u(keys[8], (1, H)).T                            # (H, 1)
    bfc = u(keys[9], (1,)).reshape(1, 1)                  # (1, 1)
    return (wih0, whh0, b0, wih1, whh1, b1, wfc, bfc)


def _reference_forward(x, params, mxu_dtype=jnp.float32):
    """Pure-JAX reference (PyTorch gate order). With mxu_dtype=bf16 it mirrors
    the kernel's mixed-precision matmuls; with f32 it is the exact module."""
    (wih0, whh0, b0, wih1, whh1, b1, wfc, bfc) = params
    B, T, _ = x.shape
    whh0m = whh0.astype(mxu_dtype)
    wih1m = wih1.astype(mxu_dtype)
    whh1m = whh1.astype(mxu_dtype)

    def cell(gates, c_prev):
        i = jax.nn.sigmoid(gates[:, 0 * H:1 * H])
        f = jax.nn.sigmoid(gates[:, 1 * H:2 * H])
        g = jnp.tanh(gates[:, 2 * H:3 * H])
        o = jax.nn.sigmoid(gates[:, 3 * H:4 * H])
        c = f * c_prev + i * g
        return o * jnp.tanh(c), c

    h1 = c1 = h2 = c2 = jnp.zeros((B, H), jnp.float32)
    for t in range(T):
        x_t = x[:, t, :]                                   # (B, 1)
        g0 = (x_t @ wih0 + b0
              + jnp.dot(h1.astype(mxu_dtype), whh0m,
                        preferred_element_type=jnp.float32))
        h1, c1 = cell(g0, c1)
        g1 = (jnp.dot(h1.astype(mxu_dtype), wih1m,
                      preferred_element_type=jnp.float32)
              + jnp.dot(h2.astype(mxu_dtype), whh1m,
                        preferred_element_type=jnp.float32)
              + b1)
        h2, c2 = cell(g1, c2)
    return h2 @ wfc + bfc


if __name__ == "__main__":
    key = jax.random.PRNGKey(0)
    kx, kp = jax.random.split(key)

    B, T = 8, 8                                            # small, seq of scalars
    x = jax.random.normal(kx, (B, T, 1), jnp.float32)
    params = init_params(kp)

    out = jax.block_until_ready(net_forward(x, params))
    assert out.shape == (B, 1)

    # Tight check vs a reference that mirrors the kernel's bf16-MXU numerics,
    # loose check vs the exact f32 module (bf16 operands shift the result by
    # ~1e-3 on this depth of recurrence, per the performance review).
    ref_mixed = _reference_forward(x, params, mxu_dtype=jnp.bfloat16)
    ref_f32 = _reference_forward(x, params, mxu_dtype=jnp.float32)
    assert jnp.allclose(out, ref_mixed, atol=5e-3, rtol=5e-3), \
        "mismatch vs bf16-mirrored reference"
    assert jnp.allclose(out, ref_f32, atol=3e-2, rtol=3e-2), \
        "mismatch vs f32 reference"
    print("KERNEL_OK")
</pallas_src>

<mosaic_0001>
module attributes {stable_mosaic.version = 11 : i64} {
  func.func @_lstm_fc_kernel(%arg0: memref<8x8x1xf32, #tpu.memory_space<vmem>>, %arg1: memref<1x128xf32, #tpu.memory_space<vmem>>, %arg2: memref<32x128xbf16, #tpu.memory_space<vmem>>, %arg3: memref<1x128xf32, #tpu.memory_space<vmem>>, %arg4: memref<32x128xbf16, #tpu.memory_space<vmem>>, %arg5: memref<32x128xbf16, #tpu.memory_space<vmem>>, %arg6: memref<1x128xf32, #tpu.memory_space<vmem>>, %arg7: memref<1x32xf32, #tpu.memory_space<vmem>>, %arg8: memref<1x1xf32, #tpu.memory_space<vmem>>, %arg9: memref<8x1xf32, #tpu.memory_space<vmem>>) attributes {dimension_semantics = [], scalar_prefetch = 0 : i64, scratch_operands = 0 : i64, tpu.core_type = #tpu.core_type<tc>} {
    %c0 = arith.constant 0 : index
    %c0_0 = arith.constant 0 : index
    %0 = vector.load %arg2[%c0, %c0_0] : memref<32x128xbf16, #tpu.memory_space<vmem>>, vector<32x128xbf16>
    %c0_1 = arith.constant 0 : index
    %c0_2 = arith.constant 0 : index
    %1 = vector.load %arg4[%c0_1, %c0_2] : memref<32x128xbf16, #tpu.memory_space<vmem>>, vector<32x128xbf16>
    %c0_3 = arith.constant 0 : index
    %c0_4 = arith.constant 0 : index
    %2 = vector.load %arg5[%c0_3, %c0_4] : memref<32x128xbf16, #tpu.memory_space<vmem>>, vector<32x128xbf16>
    %c0_5 = arith.constant 0 : index
    %c0_6 = arith.constant 0 : index
    %c0_7 = arith.constant 0 : index
    %3 = vector.load %arg0[%c0_5, %c0_6, %c0_7] : memref<8x8x1xf32, #tpu.memory_space<vmem>>, vector<8x8x1xf32>
    %c0_8 = arith.constant 0 : index
    %c0_9 = arith.constant 0 : index
    %4 = vector.load %arg1[%c0_8, %c0_9] : memref<1x128xf32, #tpu.memory_space<vmem>>, vector<1x128xf32>
    %5 = vector.shape_cast %4 : vector<1x128xf32> to vector<1x1x128xf32>
    %6 = vector.broadcast %3 : vector<8x8x1xf32> to vector<8x8x128xf32>
    %7 = vector.broadcast %5 : vector<1x1x128xf32> to vector<8x8x128xf32>
    %8 = arith.mulf %6, %7 : vector<8x8x128xf32>
    %c0_10 = arith.constant 0 : index
    %c0_11 = arith.constant 0 : index
    %9 = vector.load %arg3[%c0_10, %c0_11] : memref<1x128xf32, #tpu.memory_space<vmem>>, vector<1x128xf32>
    %10 = vector.shape_cast %9 : vector<1x128xf32> to vector<1x1x128xf32>
    %11 = vector.broadcast %10 : vector<1x1x128xf32> to vector<8x8x128xf32>
    %12 = arith.addf %8, %11 : vector<8x8x128xf32>
    %c0_12 = arith.constant 0 : index
    %c0_13 = arith.constant 0 : index
    %13 = vector.load %arg6[%c0_12, %c0_13] : memref<1x128xf32, #tpu.memory_space<vmem>>, vector<1x128xf32>
    %14 = vector.shape_cast %13 : vector<1x128xf32> to vector<1x128xf32>
    %15 = vector.broadcast %14 : vector<1x128xf32> to vector<8x128xf32>
    %cst = arith.constant 0.000000e+00 : f32
    %16 = vector.broadcast %cst : f32 to vector<8x32xf32>
    %17 = vector.extract_strided_slice %12 {offsets = [0, 0, 0], sizes = [1, 8, 128], strides = [1, 1, 1]} : vector<8x8x128xf32> to vector<1x8x128xf32>
    %18 = vector.shape_cast %17 : vector<1x8x128xf32> to vector<8x128xf32>
    %19 = arith.truncf %16 : vector<8x32xf32> to vector<8x32xbf16>
    %cst_14 = arith.constant dense<0.000000e+00> : vector<8x128xf32>
    %20 = tpu.matmul %19, %0, %cst_14 {dimension_numbers = #tpu.dot_dimension_numbers<[1], [0], [0], [1], [0, 0, 1, 1], [], []>} : vector<8x32xbf16>, vector<32x128xbf16>, vector<8x128xf32> -> vector<8x128xf32>
    %21 = arith.addf %18, %20 : vector<8x128xf32>
    %22 = vector.extract_strided_slice %21 {offsets = [0, 0], sizes = [8, 96], strides = [1, 1]} : vector<8x128xf32> to vector<8x96xf32>
    %23 = arith.negf %22 : vector<8x96xf32>
    %24 = math.exp %23 : vector<8x96xf32>
    %cst_15 = arith.constant 1.000000e+00 : f32
    %25 = vector.broadcast %cst_15 : f32 to vector<8x96xf32>
    %26 = arith.addf %25, %24 : vector<8x96xf32>
    %27 = arith.divf %25, %26 : vector<8x96xf32>
    %28 = vector.extract_strided_slice %21 {offsets = [0, 96], sizes = [8, 32], strides = [1, 1]} : vector<8x128xf32> to vector<8x32xf32>
    %29 = math.tanh %28 : vector<8x32xf32>
    %30 = vector.extract_strided_slice %27 {offsets = [0, 0], sizes = [8, 32], strides = [1, 1]} : vector<8x96xf32> to vector<8x32xf32>
    %31 = vector.extract_strided_slice %27 {offsets = [0, 32], sizes = [8, 32], strides = [1, 1]} : vector<8x96xf32> to vector<8x32xf32>
    %32 = vector.extract_strided_slice %27 {offsets = [0, 64], sizes = [8, 32], strides = [1, 1]} : vector<8x96xf32> to vector<8x32xf32>
    %33 = arith.mulf %31, %16 : vector<8x32xf32>
    %34 = arith.mulf %30, %29 : vector<8x32xf32>
    %35 = arith.addf %33, %34 : vector<8x32xf32>
    %36 = math.tanh %35 : vector<8x32xf32>
    %37 = arith.mulf %32, %36 : vector<8x32xf32>
    %38 = arith.truncf %37 : vector<8x32xf32> to vector<8x32xbf16>
    %cst_16 = arith.constant dense<0.000000e+00> : vector<8x128xf32>
    %39 = tpu.matmul %38, %1, %cst_16 {dimension_numbers = #tpu.dot_dimension_numbers<[1], [0], [0], [1], [0, 0, 1, 1], [], []>} : vector<8x32xbf16>, vector<32x128xbf16>, vector<8x128xf32> -> vector<8x128xf32>
    %40 = arith.truncf %16 : vector<8x32xf32> to vector<8x32xbf16>
    %cst_17 = arith.constant dense<0.000000e+00> : vector<8x128xf32>
    %41 = tpu.matmul %40, %2, %cst_17 {dimension_numbers = #tpu.dot_dimension_numbers<[1], [0], [0], [1], [0, 0, 1, 1], [], []>} : vector<8x32xbf16>, vector<32x128xbf16>, vector<8x128xf32> -> vector<8x128xf32>
    %42 = arith.addf %39, %41 : vector<8x128xf32>
    %43 = arith.addf %42, %15 : vector<8x128xf32>
    %44 = vector.extract_strided_slice %43 {offsets = [0, 0], sizes = [8, 96], strides = [1, 1]} : vector<8x128xf32> to vector<8x96xf32>
    %45 = arith.negf %44 : vector<8x96xf32>
    %46 = math.exp %45 : vector<8x96xf32>
    %cst_18 = arith.constant 1.000000e+00 : f32
    %47 = vector.broadcast %cst_18 : f32 to vector<8x96xf32>
    %48 = arith.addf %47, %46 : vector<8x96xf32>
    %49 = arith.divf %47, %48 : vector<8x96xf32>
    %50 = vector.extract_strided_slice %43 {offsets = [0, 96], sizes = [8, 32], strides = [1, 1]} : vector<8x128xf32> to vector<8x32xf32>
    %51 = math.tanh %50 : vector<8x32xf32>
    %52 = vector.extract_strided_slice %49 {offsets = [0, 0], sizes = [8, 32], strides = [1, 1]} : vector<8x96xf32> to vector<8x32xf32>
    %53 = vector.extract_strided_slice %49 {offsets = [0, 32], sizes = [8, 32], strides = [1, 1]} : vector<8x96xf32> to vector<8x32xf32>
    %54 = vector.extract_strided_slice %49 {offsets = [0, 64], sizes = [8, 32], strides = [1, 1]} : vector<8x96xf32> to vector<8x32xf32>
    %55 = arith.mulf %53, %16 : vector<8x32xf32>
    %56 = arith.mulf %52, %51 : vector<8x32xf32>
    %57 = arith.addf %55, %56 : vector<8x32xf32>
    %58 = math.tanh %57 : vector<8x32xf32>
    %59 = arith.mulf %54, %58 : vector<8x32xf32>
    %60 = vector.extract_strided_slice %12 {offsets = [1, 0, 0], sizes = [1, 8, 128], strides = [1, 1, 1]} : vector<8x8x128xf32> to vector<1x8x128xf32>
    %61 = vector.shape_cast %60 : vector<1x8x128xf32> to vector<8x128xf32>
    %62 = arith.truncf %37 : vector<8x32xf32> to vector<8x32xbf16>
    %cst_19 = arith.constant dense<0.000000e+00> : vector<8x128xf32>
    %63 = tpu.matmul %62, %0, %cst_19 {dimension_numbers = #tpu.dot_dimension_numbers<[1], [0], [0], [1], [0, 0, 1, 1], [], []>} : vector<8x32xbf16>, vector<32x128xbf16>, vector<8x128xf32> -> vector<8x128xf32>
    %64 = arith.addf %61, %63 : vector<8x128xf32>
    %65 = vector.extract_strided_slice %64 {offsets = [0, 0], sizes = [8, 96], strides = [1, 1]} : vector<8x128xf32> to vector<8x96xf32>
    %66 = arith.negf %65 : vector<8x96xf32>
    %67 = math.exp %66 : vector<8x96xf32>
    %cst_20 = arith.constant 1.000000e+00 : f32
    %68 = vector.broadcast %cst_20 : f32 to vector<8x96xf32>
    %69 = arith.addf %68, %67 : vector<8x96xf32>
    %70 = arith.divf %68, %69 : vector<8x96xf32>
    %71 = vector.extract_strided_slice %64 {offsets = [0, 96], sizes = [8, 32], strides = [1, 1]} : vector<8x128xf32> to vector<8x32xf32>
    %72 = math.tanh %71 : vector<8x32xf32>
    %73 = vector.extract_strided_slice %70 {offsets = [0, 0], sizes = [8, 32], strides = [1, 1]} : vector<8x96xf32> to vector<8x32xf32>
    %74 = vector.extract_strided_slice %70 {offsets = [0, 32], sizes = [8, 32], strides = [1, 1]} : vector<8x96xf32> to vector<8x32xf32>
    %75 = vector.extract_strided_slice %70 {offsets = [0, 64], sizes = [8, 32], strides = [1, 1]} : vector<8x96xf32> to vector<8x32xf32>
    %76 = arith.mulf %74, %35 : vector<8x32xf32>
    %77 = arith.mulf %73, %72 : vector<8x32xf32>
    %78 = arith.addf %76, %77 : vector<8x32xf32>
    %79 = math.tanh %78 : vector<8x32xf32>
    %80 = arith.mulf %75, %79 : vector<8x32xf32>
    %81 = arith.truncf %80 : vector<8x32xf32> to vector<8x32xbf16>
    %cst_21 = arith.constant dense<0.000000e+00> : vector<8x128xf32>
    %82 = tpu.matmul %81, %1, %cst_21 {dimension_numbers = #tpu.dot_dimension_numbers<[1], [0], [0], [1], [0, 0, 1, 1], [], []>} : vector<8x32xbf16>, vector<32x128xbf16>, vector<8x128xf32> -> vector<8x128xf32>
    %83 = arith.truncf %59 : vector<8x32xf32> to vector<8x32xbf16>
    %cst_22 = arith.constant dense<0.000000e+00> : vector<8x128xf32>
    %84 = tpu.matmul %83, %2, %cst_22 {dimension_numbers = #tpu.dot_dimension_numbers<[1], [0], [0], [1], [0, 0, 1, 1], [], []>} : vector<8x32xbf16>, vector<32x128xbf16>, vector<8x128xf32> -> vector<8x128xf32>
    %85 = arith.addf %82, %84 : vector<8x128xf32>
    %86 = arith.addf %85, %15 : vector<8x128xf32>
    %87 = vector.extract_strided_slice %86 {offsets = [0, 0], sizes = [8, 96], strides = [1, 1]} : vector<8x128xf32> to vector<8x96xf32>
    %88 = arith.negf %87 : vector<8x96xf32>
    %89 = math.exp %88 : vector<8x96xf32>
    %cst_23 = arith.constant 1.000000e+00 : f32
    %90 = vector.broadcast %cst_23 : f32 to vector<8x96xf32>
    %91 = arith.addf %90, %89 : vector<8x96xf32>
    %92 = arith.divf %90, %91 : vector<8x96xf32>
    %93 = vector.extract_strided_slice %86 {offsets = [0, 96], sizes = [8, 32], strides = [1, 1]} : vector<8x128xf32> to vector<8x32xf32>
    %94 = math.tanh %93 : vector<8x32xf32>
    %95 = vector.extract_strided_slice %92 {offsets = [0, 0], sizes = [8, 32], strides = [1, 1]} : vector<8x96xf32> to vector<8x32xf32>
    %96 = vector.extract_strided_slice %92 {offsets = [0, 32], sizes = [8, 32], strides = [1, 1]} : vector<8x96xf32> to vector<8x32xf32>
    %97 = vector.extract_strided_slice %92 {offsets = [0, 64], sizes = [8, 32], strides = [1, 1]} : vector<8x96xf32> to vector<8x32xf32>
    %98 = arith.mulf %96, %57 : vector<8x32xf32>
    %99 = arith.mulf %95, %94 : vector<8x32xf32>
    %100 = arith.addf %98, %99 : vector<8x32xf32>
    %101 = math.tanh %100 : vector<8x32xf32>
    %102 = arith.mulf %97, %101 : vector<8x32xf32>
    %103 = vector.extract_strided_slice %12 {offsets = [2, 0, 0], sizes = [1, 8, 128], strides = [1, 1, 1]} : vector<8x8x128xf32> to vector<1x8x128xf32>
    %104 = vector.shape_cast %103 : vector<1x8x128xf32> to vector<8x128xf32>
    %105 = arith.truncf %80 : vector<8x32xf32> to vector<8x32xbf16>
    %cst_24 = arith.constant dense<0.000000e+00> : vector<8x128xf32>
    %106 = tpu.matmul %105, %0, %cst_24 {dimension_numbers = #tpu.dot_dimension_numbers<[1], [0], [0], [1], [0, 0, 1, 1], [], []>} : vector<8x32xbf16>, vector<32x128xbf16>, vector<8x128xf32> -> vector<8x128xf32>
    %107 = arith.addf %104, %106 : vector<8x128xf32>
    %108 = vector.extract_strided_slice %107 {offsets = [0, 0], sizes = [8, 96], strides = [1, 1]} : vector<8x128xf32> to vector<8x96xf32>
    %109 = arith.negf %108 : vector<8x96xf32>
    %110 = math.exp %109 : vector<8x96xf32>
    %cst_25 = arith.constant 1.000000e+00 : f32
    %111 = vector.broadcast %cst_25 : f32 to vector<8x96xf32>
    %112 = arith.addf %111, %110 : vector<8x96xf32>
    %113 = arith.divf %111, %112 : vector<8x96xf32>
    %114 = vector.extract_strided_slice %107 {offsets = [0, 96], sizes = [8, 32], strides = [1, 1]} : vector<8x128xf32> to vector<8x32xf32>
    %115 = math.tanh %114 : vector<8x32xf32>
    %116 = vector.extract_strided_slice %113 {offsets = [0, 0], sizes = [8, 32], strides = [1, 1]} : vector<8x96xf32> to vector<8x32xf32>
    %117 = vector.extract_strided_slice %113 {offsets = [0, 32], sizes = [8, 32], strides = [1, 1]} : vector<8x96xf32> to vector<8x32xf32>
    %118 = vector.extract_strided_slice %113 {offsets = [0, 64], sizes = [8, 32], strides = [1, 1]} : vector<8x96xf32> to vector<8x32xf32>
    %119 = arith.mulf %117, %78 : vector<8x32xf32>
    %120 = arith.mulf %116, %115 : vector<8x32xf32>
    %121 = arith.addf %119, %120 : vector<8x32xf32>
    %122 = math.tanh %121 : vector<8x32xf32>
    %123 = arith.mulf %118, %122 : vector<8x32xf32>
    %124 = arith.truncf %123 : vector<8x32xf32> to vector<8x32xbf16>
    %cst_26 = arith.constant dense<0.000000e+00> : vector<8x128xf32>
    %125 = tpu.matmul %124, %1, %cst_26 {dimension_numbers = #tpu.dot_dimension_numbers<[1], [0], [0], [1], [0, 0, 1, 1], [], []>} : vector<8x32xbf16>, vector<32x128xbf16>, vector<8x128xf32> -> vector<8x128xf32>
    %126 = arith.truncf %102 : vector<8x32xf32> to vector<8x32xbf16>
    %cst_27 = arith.constant dense<0.000000e+00> : vector<8x128xf32>
    %127 = tpu.matmul %126, %2, %cst_27 {dimension_numbers = #tpu.dot_dimension_numbers<[1], [0], [0], [1], [0, 0, 1, 1], [], []>} : vector<8x32xbf16>, vector<32x128xbf16>, vector<8x128xf32> -> vector<8x128xf32>
    %128 = arith.addf %125, %127 : vector<8x128xf32>
    %129 = arith.addf %128, %15 : vector<8x128xf32>
    %130 = vector.extract_strided_slice %129 {offsets = [0, 0], sizes = [8, 96], strides = [1, 1]} : vector<8x128xf32> to vector<8x96xf32>
    %131 = arith.negf %130 : vector<8x96xf32>
    %132 = math.exp %131 : vector<8x96xf32>
    %cst_28 = arith.constant 1.000000e+00 : f32
    %133 = vector.broadcast %cst_28 : f32 to vector<8x96xf32>
    %134 = arith.addf %133, %132 : vector<8x96xf32>
    %135 = arith.divf %133, %134 : vector<8x96xf32>
    %136 = vector.extract_strided_slice %129 {offsets = [0, 96], sizes = [8, 32], strides = [1, 1]} : vector<8x128xf32> to vector<8x32xf32>
    %137 = math.tanh %136 : vector<8x32xf32>
    %138 = vector.extract_strided_slice %135 {offsets = [0, 0], sizes = [8, 32], strides = [1, 1]} : vector<8x96xf32> to vector<8x32xf32>
    %139 = vector.extract_strided_slice %135 {offsets = [0, 32], sizes = [8, 32], strides = [1, 1]} : vector<8x96xf32> to vector<8x32xf32>
    %140 = vector.extract_strided_slice %135 {offsets = [0, 64], sizes = [8, 32], strides = [1, 1]} : vector<8x96xf32> to vector<8x32xf32>
    %141 = arith.mulf %139, %100 : vector<8x32xf32>
    %142 = arith.mulf %138, %137 : vector<8x32xf32>
    %143 = arith.addf %141, %142 : vector<8x32xf32>
    %144 = math.tanh %143 : vector<8x32xf32>
    %145 = arith.mulf %140, %144 : vector<8x32xf32>
    %146 = vector.extract_strided_slice %12 {offsets = [3, 0, 0], sizes = [1, 8, 128], strides = [1, 1, 1]} : vector<8x8x128xf32> to vector<1x8x128xf32>
    %147 = vector.shape_cast %146 : vector<1x8x128xf32> to vector<8x128xf32>
    %148 = arith.truncf %123 : vector<8x32xf32> to vector<8x32xbf16>
    %cst_29 = arith.constant dense<0.000000e+00> : vector<8x128xf32>
    %149 = tpu.matmul %148, %0, %cst_29 {dimension_numbers = #tpu.dot_dimension_numbers<[1], [0], [0], [1], [0, 0, 1, 1], [], []>} : vector<8x32xbf16>, vector<32x128xbf16>, vector<8x128xf32> -> vector<8x128xf32>
    %150 = arith.addf %147, %149 : vector<8x128xf32>
    %151 = vector.extract_strided_slice %150 {offsets = [0, 0], sizes = [8, 96], strides = [1, 1]} : vector<8x128xf32> to vector<8x96xf32>
    %152 = arith.negf %151 : vector<8x96xf32>
    %153 = math.exp %152 : vector<8x96xf32>
    %cst_30 = arith.constant 1.000000e+00 : f32
    %154 = vector.broadcast %cst_30 : f32 to vector<8x96xf32>
    %155 = arith.addf %154, %153 : vector<8x96xf32>
    %156 = arith.divf %154, %155 : vector<8x96xf32>
    %157 = vector.extract_strided_slice %150 {offsets = [0, 96], sizes = [8, 32], strides = [1, 1]} : vector<8x128xf32> to vector<8x32xf32>
    %158 = math.tanh %157 : vector<8x32xf32>
    %159 = vector.extract_strided_slice %156 {offsets = [0, 0], sizes = [8, 32], strides = [1, 1]} : vector<8x96xf32> to vector<8x32xf32>
    %160 = vector.extract_strided_slice %156 {offsets = [0, 32], sizes = [8, 32], strides = [1, 1]} : vector<8x96xf32> to vector<8x32xf32>
    %161 = vector.extract_strided_slice %156 {offsets = [0, 64], sizes = [8, 32], strides = [1, 1]} : vector<8x96xf32> to vector<8x32xf32>
    %162 = arith.mulf %160, %121 : vector<8x32xf32>
    %163 = arith.mulf %159, %158 : vector<8x32xf32>
    %164 = arith.addf %162, %163 : vector<8x32xf32>
    %165 = math.tanh %164 : vector<8x32xf32>
    %166 = arith.mulf %161, %165 : vector<8x32xf32>
    %167 = arith.truncf %166 : vector<8x32xf32> to vector<8x32xbf16>
    %cst_31 = arith.constant dense<0.000000e+00> : vector<8x128xf32>
    %168 = tpu.matmul %167, %1, %cst_31 {dimension_numbers = #tpu.dot_dimension_numbers<[1], [0], [0], [1], [0, 0, 1, 1], [], []>} : vector<8x32xbf16>, vector<32x128xbf16>, vector<8x128xf32> -> vector<8x128xf32>
    %169 = arith.truncf %145 : vector<8x32xf32> to vector<8x32xbf16>
    %cst_32 = arith.constant dense<0.000000e+00> : vector<8x128xf32>
    %170 = tpu.matmul %169, %2, %cst_32 {dimension_numbers = #tpu.dot_dimension_numbers<[1], [0], [0], [1], [0, 0, 1, 1], [], []>} : vector<8x32xbf16>, vector<32x128xbf16>, vector<8x128xf32> -> vector<8x128xf32>
    %171 = arith.addf %168, %170 : vector<8x128xf32>
    %172 = arith.addf %171, %15 : vector<8x128xf32>
    %173 = vector.extract_strided_slice %172 {offsets = [0, 0], sizes = [8, 96], strides = [1, 1]} : vector<8x128xf32> to vector<8x96xf32>
    %174 = arith.negf %173 : vector<8x96xf32>
    %175 = math.exp %174 : vector<8x96xf32>
    %cst_33 = arith.constant 1.000000e+00 : f32
    %176 = vector.broadcast %cst_33 : f32 to vector<8x96xf32>
    %177 = arith.addf %176, %175 : vector<8x96xf32>
    %178 = arith.divf %176, %177 : vector<8x96xf32>
    %179 = vector.extract_strided_slice %172 {offsets = [0, 96], sizes = [8, 32], strides = [1, 1]} : vector<8x128xf32> to vector<8x32xf32>
    %180 = math.tanh %179 : vector<8x32xf32>
    %181 = vector.extract_strided_slice %178 {offsets = [0, 0], sizes = [8, 32], strides = [1, 1]} : vector<8x96xf32> to vector<8x32xf32>
    %182 = vector.extract_strided_slice %178 {offsets = [0, 32], sizes = [8, 32], strides = [1, 1]} : vector<8x96xf32> to vector<8x32xf32>
    %183 = vector.extract_strided_slice %178 {offsets = [0, 64], sizes = [8, 32], strides = [1, 1]} : vector<8x96xf32> to vector<8x32xf32>
    %184 = arith.mulf %182, %143 : vector<8x32xf32>
    %185 = arith.mulf %181, %180 : vector<8x32xf32>
    %186 = arith.addf %184, %185 : vector<8x32xf32>
    %187 = math.tanh %186 : vector<8x32xf32>
    %188 = arith.mulf %183, %187 : vector<8x32xf32>
    %189 = vector.extract_strided_slice %12 {offsets = [4, 0, 0], sizes = [1, 8, 128], strides = [1, 1, 1]} : vector<8x8x128xf32> to vector<1x8x128xf32>
    %190 = vector.shape_cast %189 : vector<1x8x128xf32> to vector<8x128xf32>
    %191 = arith.truncf %166 : vector<8x32xf32> to vector<8x32xbf16>
    %cst_34 = arith.constant dense<0.000000e+00> : vector<8x128xf32>
    %192 = tpu.matmul %191, %0, %cst_34 {dimension_numbers = #tpu.dot_dimension_numbers<[1], [0], [0], [1], [0, 0, 1, 1], [], []>} : vector<8x32xbf16>, vector<32x128xbf16>, vector<8x128xf32> -> vector<8x128xf32>
    %193 = arith.addf %190, %192 : vector<8x128xf32>
    %194 = vector.extract_strided_slice %193 {offsets = [0, 0], sizes = [8, 96], strides = [1, 1]} : vector<8x128xf32> to vector<8x96xf32>
    %195 = arith.negf %194 : vector<8x96xf32>
    %196 = math.exp %195 : vector<8x96xf32>
    %cst_35 = arith.constant 1.000000e+00 : f32
    %197 = vector.broadcast %cst_35 : f32 to vector<8x96xf32>
    %198 = arith.addf %197, %196 : vector<8x96xf32>
    %199 = arith.divf %197, %198 : vector<8x96xf32>
    %200 = vector.extract_strided_slice %193 {offsets = [0, 96], sizes = [8, 32], strides = [1, 1]} : vector<8x128xf32> to vector<8x32xf32>
    %201 = math.tanh %200 : vector<8x32xf32>
    %202 = vector.extract_strided_slice %199 {offsets = [0, 0], sizes = [8, 32], strides = [1, 1]} : vector<8x96xf32> to vector<8x32xf32>
    %203 = vector.extract_strided_slice %199 {offsets = [0, 32], sizes = [8, 32], strides = [1, 1]} : vector<8x96xf32> to vector<8x32xf32>
    %204 = vector.extract_strided_slice %199 {offsets = [0, 64], sizes = [8, 32], strides = [1, 1]} : vector<8x96xf32> to vector<8x32xf32>
    %205 = arith.mulf %203, %164 : vector<8x32xf32>
    %206 = arith.mulf %202, %201 : vector<8x32xf32>
    %207 = arith.addf %205, %206 : vector<8x32xf32>
    %208 = math.tanh %207 : vector<8x32xf32>
    %209 = arith.mulf %204, %208 : vector<8x32xf32>
    %210 = arith.truncf %209 : vector<8x32xf32> to vector<8x32xbf16>
    %cst_36 = arith.constant dense<0.000000e+00> : vector<8x128xf32>
    %211 = tpu.matmul %210, %1, %cst_36 {dimension_numbers = #tpu.dot_dimension_numbers<[1], [0], [0], [1], [0, 0, 1, 1], [], []>} : vector<8x32xbf16>, vector<32x128xbf16>, vector<8x128xf32> -> vector<8x128xf32>
    %212 = arith.truncf %188 : vector<8x32xf32> to vector<8x32xbf16>
    %cst_37 = arith.constant dense<0.000000e+00> : vector<8x128xf32>
    %213 = tpu.matmul %212, %2, %cst_37 {dimension_numbers = #tpu.dot_dimension_numbers<[1], [0], [0], [1], [0, 0, 1, 1], [], []>} : vector<8x32xbf16>, vector<32x128xbf16>, vector<8x128xf32> -> vector<8x128xf32>
    %214 = arith.addf %211, %213 : vector<8x128xf32>
    %215 = arith.addf %214, %15 : vector<8x128xf32>
    %216 = vector.extract_strided_slice %215 {offsets = [0, 0], sizes = [8, 96], strides = [1, 1]} : vector<8x128xf32> to vector<8x96xf32>
    %217 = arith.negf %216 : vector<8x96xf32>
    %218 = math.exp %217 : vector<8x96xf32>
    %cst_38 = arith.constant 1.000000e+00 : f32
    %219 = vector.broadcast %cst_38 : f32 to vector<8x96xf32>
    %220 = arith.addf %219, %218 : vector<8x96xf32>
    %221 = arith.divf %219, %220 : vector<8x96xf32>
    %222 = vector.extract_strided_slice %215 {offsets = [0, 96], sizes = [8, 32], strides = [1, 1]} : vector<8x128xf32> to vector<8x32xf32>
    %223 = math.tanh %222 : vector<8x32xf32>
    %224 = vector.extract_strided_slice %221 {offsets = [0, 0], sizes = [8, 32], strides = [1, 1]} : vector<8x96xf32> to vector<8x32xf32>
    %225 = vector.extract_strided_slice %221 {offsets = [0, 32], sizes = [8, 32], strides = [1, 1]} : vector<8x96xf32> to vector<8x32xf32>
    %226 = vector.extract_strided_slice %221 {offsets = [0, 64], sizes = [8, 32], strides = [1, 1]} : vector<8x96xf32> to vector<8x32xf32>
    %227 = arith.mulf %225, %186 : vector<8x32xf32>
    %228 = arith.mulf %224, %223 : vector<8x32xf32>
    %229 = arith.addf %227, %228 : vector<8x32xf32>
    %230 = math.tanh %229 : vector<8x32xf32>
    %231 = arith.mulf %226, %230 : vector<8x32xf32>
    %232 = vector.extract_strided_slice %12 {offsets = [5, 0, 0], sizes = [1, 8, 128], strides = [1, 1, 1]} : vector<8x8x128xf32> to vector<1x8x128xf32>
    %233 = vector.shape_cast %232 : vector<1x8x128xf32> to vector<8x128xf32>
    %234 = arith.truncf %209 : vector<8x32xf32> to vector<8x32xbf16>
    %cst_39 = arith.constant dense<0.000000e+00> : vector<8x128xf32>
    %235 = tpu.matmul %234, %0, %cst_39 {dimension_numbers = #tpu.dot_dimension_numbers<[1], [0], [0], [1], [0, 0, 1, 1], [], []>} : vector<8x32xbf16>, vector<32x128xbf16>, vector<8x128xf32> -> vector<8x128xf32>
    %236 = arith.addf %233, %235 : vector<8x128xf32>
    %237 = vector.extract_strided_slice %236 {offsets = [0, 0], sizes = [8, 96], strides = [1, 1]} : vector<8x128xf32> to vector<8x96xf32>
    %238 = arith.negf %237 : vector<8x96xf32>
    %239 = math.exp %238 : vector<8x96xf32>
    %cst_40 = arith.constant 1.000000e+00 : f32
    %240 = vector.broadcast %cst_40 : f32 to vector<8x96xf32>
    %241 = arith.addf %240, %239 : vector<8x96xf32>
    %242 = arith.divf %240, %241 : vector<8x96xf32>
    %243 = vector.extract_strided_slice %236 {offsets = [0, 96], sizes = [8, 32], strides = [1, 1]} : vector<8x128xf32> to vector<8x32xf32>
    %244 = math.tanh %243 : vector<8x32xf32>
    %245 = vector.extract_strided_slice %242 {offsets = [0, 0], sizes = [8, 32], strides = [1, 1]} : vector<8x96xf32> to vector<8x32xf32>
    %246 = vector.extract_strided_slice %242 {offsets = [0, 32], sizes = [8, 32], strides = [1, 1]} : vector<8x96xf32> to vector<8x32xf32>
    %247 = vector.extract_strided_slice %242 {offsets = [0, 64], sizes = [8, 32], strides = [1, 1]} : vector<8x96xf32> to vector<8x32xf32>
    %248 = arith.mulf %246, %207 : vector<8x32xf32>
    %249 = arith.mulf %245, %244 : vector<8x32xf32>
    %250 = arith.addf %248, %249 : vector<8x32xf32>
    %251 = math.tanh %250 : vector<8x32xf32>
    %252 = arith.mulf %247, %251 : vector<8x32xf32>
    %253 = arith.truncf %252 : vector<8x32xf32> to vector<8x32xbf16>
    %cst_41 = arith.constant dense<0.000000e+00> : vector<8x128xf32>
    %254 = tpu.matmul %253, %1, %cst_41 {dimension_numbers = #tpu.dot_dimension_numbers<[1], [0], [0], [1], [0, 0, 1, 1], [], []>} : vector<8x32xbf16>, vector<32x128xbf16>, vector<8x128xf32> -> vector<8x128xf32>
    %255 = arith.truncf %231 : vector<8x32xf32> to vector<8x32xbf16>
    %cst_42 = arith.constant dense<0.000000e+00> : vector<8x128xf32>
    %256 = tpu.matmul %255, %2, %cst_42 {dimension_numbers = #tpu.dot_dimension_numbers<[1], [0], [0], [1], [0, 0, 1, 1], [], []>} : vector<8x32xbf16>, vector<32x128xbf16>, vector<8x128xf32> -> vector<8x128xf32>
    %257 = arith.addf %254, %256 : vector<8x128xf32>
    %258 = arith.addf %257, %15 : vector<8x128xf32>
    %259 = vector.extract_strided_slice %258 {offsets = [0, 0], sizes = [8, 96], strides = [1, 1]} : vector<8x128xf32> to vector<8x96xf32>
    %260 = arith.negf %259 : vector<8x96xf32>
    %261 = math.exp %260 : vector<8x96xf32>
    %cst_43 = arith.constant 1.000000e+00 : f32
    %262 = vector.broadcast %cst_43 : f32 to vector<8x96xf32>
    %263 = arith.addf %262, %261 : vector<8x96xf32>
    %264 = arith.divf %262, %263 : vector<8x96xf32>
    %265 = vector.extract_strided_slice %258 {offsets = [0, 96], sizes = [8, 32], strides = [1, 1]} : vector<8x128xf32> to vector<8x32xf32>
    %266 = math.tanh %265 : vector<8x32xf32>
    %267 = vector.extract_strided_slice %264 {offsets = [0, 0], sizes = [8, 32], strides = [1, 1]} : vector<8x96xf32> to vector<8x32xf32>
    %268 = vector.extract_strided_slice %264 {offsets = [0, 32], sizes = [8, 32], strides = [1, 1]} : vector<8x96xf32> to vector<8x32xf32>
    %269 = vector.extract_strided_slice %264 {offsets = [0, 64], sizes = [8, 32], strides = [1, 1]} : vector<8x96xf32> to vector<8x32xf32>
    %270 = arith.mulf %268, %229 : vector<8x32xf32>
    %271 = arith.mulf %267, %266 : vector<8x32xf32>
    %272 = arith.addf %270, %271 : vector<8x32xf32>
    %273 = math.tanh %272 : vector<8x32xf32>
    %274 = arith.mulf %269, %273 : vector<8x32xf32>
    %275 = vector.extract_strided_slice %12 {offsets = [6, 0, 0], sizes = [1, 8, 128], strides = [1, 1, 1]} : vector<8x8x128xf32> to vector<1x8x128xf32>
    %276 = vector.shape_cast %275 : vector<1x8x128xf32> to vector<8x128xf32>
    %277 = arith.truncf %252 : vector<8x32xf32> to vector<8x32xbf16>
    %cst_44 = arith.constant dense<0.000000e+00> : vector<8x128xf32>
    %278 = tpu.matmul %277, %0, %cst_44 {dimension_numbers = #tpu.dot_dimension_numbers<[1], [0], [0], [1], [0, 0, 1, 1], [], []>} : vector<8x32xbf16>, vector<32x128xbf16>, vector<8x128xf32> -> vector<8x128xf32>
    %279 = arith.addf %276, %278 : vector<8x128xf32>
    %280 = vector.extract_strided_slice %279 {offsets = [0, 0], sizes = [8, 96], strides = [1, 1]} : vector<8x128xf32> to vector<8x96xf32>
    %281 = arith.negf %280 : vector<8x96xf32>
    %282 = math.exp %281 : vector<8x96xf32>
    %cst_45 = arith.constant 1.000000e+00 : f32
    %283 = vector.broadcast %cst_45 : f32 to vector<8x96xf32>
    %284 = arith.addf %283, %282 : vector<8x96xf32>
    %285 = arith.divf %283, %284 : vector<8x96xf32>
    %286 = vector.extract_strided_slice %279 {offsets = [0, 96], sizes = [8, 32], strides = [1, 1]} : vector<8x128xf32> to vector<8x32xf32>
    %287 = math.tanh %286 : vector<8x32xf32>
    %288 = vector.extract_strided_slice %285 {offsets = [0, 0], sizes = [8, 32], strides = [1, 1]} : vector<8x96xf32> to vector<8x32xf32>
    %289 = vector.extract_strided_slice %285 {offsets = [0, 32], sizes = [8, 32], strides = [1, 1]} : vector<8x96xf32> to vector<8x32xf32>
    %290 = vector.extract_strided_slice %285 {offsets = [0, 64], sizes = [8, 32], strides = [1, 1]} : vector<8x96xf32> to vector<8x32xf32>
    %291 = arith.mulf %289, %250 : vector<8x32xf32>
    %292 = arith.mulf %288, %287 : vector<8x32xf32>
    %293 = arith.addf %291, %292 : vector<8x32xf32>
    %294 = math.tanh %293 : vector<8x32xf32>
    %295 = arith.mulf %290, %294 : vector<8x32xf32>
    %296 = arith.truncf %295 : vector<8x32xf32> to vector<8x32xbf16>
    %cst_46 = arith.constant dense<0.000000e+00> : vector<8x128xf32>
    %297 = tpu.matmul %296, %1, %cst_46 {dimension_numbers = #tpu.dot_dimension_numbers<[1], [0], [0], [1], [0, 0, 1, 1], [], []>} : vector<8x32xbf16>, vector<32x128xbf16>, vector<8x128xf32> -> vector<8x128xf32>
    %298 = arith.truncf %274 : vector<8x32xf32> to vector<8x32xbf16>
    %cst_47 = arith.constant dense<0.000000e+00> : vector<8x128xf32>
    %299 = tpu.matmul %298, %2, %cst_47 {dimension_numbers = #tpu.dot_dimension_numbers<[1], [0], [0], [1], [0, 0, 1, 1], [], []>} : vector<8x32xbf16>, vector<32x128xbf16>, vector<8x128xf32> -> vector<8x128xf32>
    %300 = arith.addf %297, %299 : vector<8x128xf32>
    %301 = arith.addf %300, %15 : vector<8x128xf32>
    %302 = vector.extract_strided_slice %301 {offsets = [0, 0], sizes = [8, 96], strides = [1, 1]} : vector<8x128xf32> to vector<8x96xf32>
    %303 = arith.negf %302 : vector<8x96xf32>
    %304 = math.exp %303 : vector<8x96xf32>
    %cst_48 = arith.constant 1.000000e+00 : f32
    %305 = vector.broadcast %cst_48 : f32 to vector<8x96xf32>
    %306 = arith.addf %305, %304 : vector<8x96xf32>
    %307 = arith.divf %305, %306 : vector<8x96xf32>
    %308 = vector.extract_strided_slice %301 {offsets = [0, 96], sizes = [8, 32], strides = [1, 1]} : vector<8x128xf32> to vector<8x32xf32>
    %309 = math.tanh %308 : vector<8x32xf32>
    %310 = vector.extract_strided_slice %307 {offsets = [0, 0], sizes = [8, 32], strides = [1, 1]} : vector<8x96xf32> to vector<8x32xf32>
    %311 = vector.extract_strided_slice %307 {offsets = [0, 32], sizes = [8, 32], strides = [1, 1]} : vector<8x96xf32> to vector<8x32xf32>
    %312 = vector.extract_strided_slice %307 {offsets = [0, 64], sizes = [8, 32], strides = [1, 1]} : vector<8x96xf32> to vector<8x32xf32>
    %313 = arith.mulf %311, %272 : vector<8x32xf32>
    %314 = arith.mulf %310, %309 : vector<8x32xf32>
    %315 = arith.addf %313, %314 : vector<8x32xf32>
    %316 = math.tanh %315 : vector<8x32xf32>
    %317 = arith.mulf %312, %316 : vector<8x32xf32>
    %318 = vector.extract_strided_slice %12 {offsets = [7, 0, 0], sizes = [1, 8, 128], strides = [1, 1, 1]} : vector<8x8x128xf32> to vector<1x8x128xf32>
    %319 = vector.shape_cast %318 : vector<1x8x128xf32> to vector<8x128xf32>
    %320 = arith.truncf %295 : vector<8x32xf32> to vector<8x32xbf16>
    %cst_49 = arith.constant dense<0.000000e+00> : vector<8x128xf32>
    %321 = tpu.matmul %320, %0, %cst_49 {dimension_numbers = #tpu.dot_dimension_numbers<[1], [0], [0], [1], [0, 0, 1, 1], [], []>} : vector<8x32xbf16>, vector<32x128xbf16>, vector<8x128xf32> -> vector<8x128xf32>
    %322 = arith.addf %319, %321 : vector<8x128xf32>
    %323 = vector.extract_strided_slice %322 {offsets = [0, 0], sizes = [8, 96], strides = [1, 1]} : vector<8x128xf32> to vector<8x96xf32>
    %324 = arith.negf %323 : vector<8x96xf32>
    %325 = math.exp %324 : vector<8x96xf32>
    %cst_50 = arith.constant 1.000000e+00 : f32
    %326 = vector.broadcast %cst_50 : f32 to vector<8x96xf32>
    %327 = arith.addf %326, %325 : vector<8x96xf32>
    %328 = arith.divf %326, %327 : vector<8x96xf32>
    %329 = vector.extract_strided_slice %322 {offsets = [0, 96], sizes = [8, 32], strides = [1, 1]} : vector<8x128xf32> to vector<8x32xf32>
    %330 = math.tanh %329 : vector<8x32xf32>
    %331 = vector.extract_strided_slice %328 {offsets = [0, 0], sizes = [8, 32], strides = [1, 1]} : vector<8x96xf32> to vector<8x32xf32>
    %332 = vector.extract_strided_slice %328 {offsets = [0, 32], sizes = [8, 32], strides = [1, 1]} : vector<8x96xf32> to vector<8x32xf32>
    %333 = vector.extract_strided_slice %328 {offsets = [0, 64], sizes = [8, 32], strides = [1, 1]} : vector<8x96xf32> to vector<8x32xf32>
    %334 = arith.mulf %332, %293 : vector<8x32xf32>
    %335 = arith.mulf %331, %330 : vector<8x32xf32>
    %336 = arith.addf %334, %335 : vector<8x32xf32>
    %337 = math.tanh %336 : vector<8x32xf32>
    %338 = arith.mulf %333, %337 : vector<8x32xf32>
    %339 = arith.truncf %338 : vector<8x32xf32> to vector<8x32xbf16>
    %cst_51 = arith.constant dense<0.000000e+00> : vector<8x128xf32>
    %340 = tpu.matmul %339, %1, %cst_51 {dimension_numbers = #tpu.dot_dimension_numbers<[1], [0], [0], [1], [0, 0, 1, 1], [], []>} : vector<8x32xbf16>, vector<32x128xbf16>, vector<8x128xf32> -> vector<8x128xf32>
    %341 = arith.truncf %317 : vector<8x32xf32> to vector<8x32xbf16>
    %cst_52 = arith.constant dense<0.000000e+00> : vector<8x128xf32>
    %342 = tpu.matmul %341, %2, %cst_52 {dimension_numbers = #tpu.dot_dimension_numbers<[1], [0], [0], [1], [0, 0, 1, 1], [], []>} : vector<8x32xbf16>, vector<32x128xbf16>, vector<8x128xf32> -> vector<8x128xf32>
    %343 = arith.addf %340, %342 : vector<8x128xf32>
    %344 = arith.addf %343, %15 : vector<8x128xf32>
    %345 = vector.extract_strided_slice %344 {offsets = [0, 0], sizes = [8, 96], strides = [1, 1]} : vector<8x128xf32> to vector<8x96xf32>
    %346 = arith.negf %345 : vector<8x96xf32>
    %347 = math.exp %346 : vector<8x96xf32>
    %cst_53 = arith.constant 1.000000e+00 : f32
    %348 = vector.broadcast %cst_53 : f32 to vector<8x96xf32>
    %349 = arith.addf %348, %347 : vector<8x96xf32>
    %350 = arith.divf %348, %349 : vector<8x96xf32>
    %351 = vector.extract_strided_slice %344 {offsets = [0, 96], sizes = [8, 32], strides = [1, 1]} : vector<8x128xf32> to vector<8x32xf32>
    %352 = math.tanh %351 : vector<8x32xf32>
    %353 = vector.extract_strided_slice %350 {offsets = [0, 0], sizes = [8, 32], strides = [1, 1]} : vector<8x96xf32> to vector<8x32xf32>
    %354 = vector.extract_strided_slice %350 {offsets = [0, 32], sizes = [8, 32], strides = [1, 1]} : vector<8x96xf32> to vector<8x32xf32>
    %355 = vector.extract_strided_slice %350 {offsets = [0, 64], sizes = [8, 32], strides = [1, 1]} : vector<8x96xf32> to vector<8x32xf32>
    %356 = arith.mulf %354, %315 : vector<8x32xf32>
    %357 = arith.mulf %353, %352 : vector<8x32xf32>
    %358 = arith.addf %356, %357 : vector<8x32xf32>
    %359 = math.tanh %358 : vector<8x32xf32>
    %360 = arith.mulf %355, %359 : vector<8x32xf32>
    %c0_54 = arith.constant 0 : index
    %c0_55 = arith.constant 0 : index
    %361 = vector.load %arg7[%c0_54, %c0_55] : memref<1x32xf32, #tpu.memory_space<vmem>>, vector<1x32xf32>
    %362 = vector.broadcast %361 : vector<1x32xf32> to vector<8x32xf32>
    %363 = arith.mulf %360, %362 : vector<8x32xf32>
    %cst_56 = arith.constant dense<0.000000e+00> : vector<8xf32>
    %364 = vector.multi_reduction <add>, %363, %cst_56 [1] : vector<8x32xf32> to vector<8xf32>
    %365 = vector.shape_cast %364 : vector<8xf32> to vector<8x1xf32>
    %c0_57 = arith.constant 0 : index
    %c0_58 = arith.constant 0 : index
    %366 = vector.load %arg8[%c0_57, %c0_58] : memref<1x1xf32, #tpu.memory_space<vmem>>, vector<1x1xf32>
    %367 = vector.broadcast %366 : vector<1x1xf32> to vector<8x1xf32>
    %368 = arith.addf %365, %367 : vector<8x1xf32>
    %c0_59 = arith.constant 0 : index
    %c0_60 = arith.constant 0 : index
    %369 = vector.load %arg9[%c0_59, %c0_60] : memref<8x1xf32, #tpu.memory_space<vmem>>, vector<8x1xf32>
    tpu.vector_store %arg9[%c0_59, %c0_60], %368 {strides = array<i32>} : memref<8x1xf32, #tpu.memory_space<vmem>>, vector<8x1xf32>,
    return
  }
}

</mosaic_0001>

<llo_original>
// kernel: tpu_custom_call.1
$region0: #{tpu_custom_call.1}
  #allocation0 [shape = 'u32[]', space=smem, size = 0x4, offset = 0x4, fixed_abs, tag = 'smem constant byte address 0x4 - core index']
  #allocation1 [shape = 'u32[144,128]{1,0:T(1,128)}', space=vmem, size = 0x12000, scoped, tag = 'internal scratch']
  #allocation2 [shape = 'f32[1,1]{1,0:T(1,128)S(1)}', space=vmem, size = 0x200, scoped, tag = 'scoped memory for tpu_custom_call.1']
  %s0 = inlined_call_operand.vmem [shape: f32[8,8,1], index: 0, kind: input, shape index: {}]
  %s1 = inlined_call_operand.vmem [shape: f32[1,128], index: 1, kind: input, shape index: {}]
  %s2 = inlined_call_operand.vmem [shape: bf16[32,128], index: 2, kind: input, shape index: {}]
  %s3 = inlined_call_operand.vmem [shape: f32[1,128], index: 3, kind: input, shape index: {}]
  %s4 = inlined_call_operand.vmem [shape: bf16[32,128], index: 4, kind: input, shape index: {}]
  %s5 = inlined_call_operand.vmem [shape: bf16[32,128], index: 5, kind: input, shape index: {}]
  %s6 = inlined_call_operand.vmem [shape: f32[1,128], index: 6, kind: input, shape index: {}]
  %s7 = inlined_call_operand.vmem [shape: f32[1,32], index: 7, kind: input, shape index: {}]
  %s8 = inlined_call_operand.<no memory space> [shape: f32[1,1], index: 8, kind: input, shape index: {}]
  %s9 = inlined_call_operand.vmem [shape: f32[8,1], index: 9, kind: output, shape index: {}]
  %s10 = sld [smem:[#allocation0]]
  $region46: #{tpu_custom_call.1} parent=0
    _
  %s12 = ssub.s32 1, %s10
  %s13 = scalar_select 0, %s12, %s10
  %v14 = vstv %s8
  %15 = vst [vmem:[#allocation2] sm:$0x1] %v14
  // Predicated region
  $region2: #{tpu_custom_call.1} parent=0 // pred_check
    _
  $region3: #{tpu_custom_call.1} parent=0 // pred_check_branch
    %17 = sbr.rel (0) target = $region5
  $region4: #{tpu_custom_call.1} parent=0 // pred_region
    _
  $region5: #{tpu_custom_call.1} parent=0 // pred_fallthru
    _
  // Predicated region
  $region6: #{tpu_custom_call.1} parent=0 // pred_check
    _
  $region7: #{tpu_custom_call.1} parent=0 // pred_check_branch
    %19 = sbr.rel (0) target = $region9
  $region8: #{tpu_custom_call.1} parent=0 // pred_region
    _
  $region9: #{tpu_custom_call.1} parent=0 // pred_fallthru
    _
  // Predicated region
  $region10: #{tpu_custom_call.1} parent=0 // pred_check
    _
  $region11: #{tpu_custom_call.1} parent=0 // pred_check_branch
    %21 = sbr.rel (0) target = $region13
  $region12: #{tpu_custom_call.1} parent=0 // pred_region
    _
  $region13: #{tpu_custom_call.1} parent=0 // pred_fallthru
    _
  // Predicated region
  $region14: #{tpu_custom_call.1} parent=0 // pred_check
    _
  $region15: #{tpu_custom_call.1} parent=0 // pred_check_branch
    %23 = sbr.rel (0) target = $region17
  $region16: #{tpu_custom_call.1} parent=0 // pred_region
    _
  $region17: #{tpu_custom_call.1} parent=0 // pred_fallthru
    _
  // Predicated region
  $region18: #{tpu_custom_call.1} parent=0 // pred_check
    _
  $region19: #{tpu_custom_call.1} parent=0 // pred_check_branch
    %25 = sbr.rel (0) target = $region21
  $region20: #{tpu_custom_call.1} parent=0 // pred_region
    _
  $region21: #{tpu_custom_call.1} parent=0 // pred_fallthru
    _
  // Predicated region
  $region22: #{tpu_custom_call.1} parent=0 // pred_check
    _
  $region23: #{tpu_custom_call.1} parent=0 // pred_check_branch
    %27 = sbr.rel (0) target = $region25
  $region24: #{tpu_custom_call.1} parent=0 // pred_region
    _
  $region25: #{tpu_custom_call.1} parent=0 // pred_fallthru
    _
  // Predicated region
  $region26: #{tpu_custom_call.1} parent=0 // pred_check
    _
  $region27: #{tpu_custom_call.1} parent=0 // pred_check_branch
    %29 = sbr.rel (0) target = $region29
  $region28: #{tpu_custom_call.1} parent=0 // pred_region
    _
  $region29: #{tpu_custom_call.1} parent=0 // pred_fallthru
    _
  // Predicated region
  $region30: #{tpu_custom_call.1} parent=0 // pred_check
    _
  $region31: #{tpu_custom_call.1} parent=0 // pred_check_branch
    %31 = sbr.rel (0) target = $region33
  $region32: #{tpu_custom_call.1} parent=0 // pred_region
    _
  $region33: #{tpu_custom_call.1} parent=0 // pred_fallthru
    _
  // Predicated region
  $region34: #{tpu_custom_call.1} parent=0 // pred_check
    _
  $region35: #{tpu_custom_call.1} parent=0 // pred_check_branch
    %33 = sbr.rel (0) target = $region37
  $region36: #{tpu_custom_call.1} parent=0 // pred_region
    _
  $region37: #{tpu_custom_call.1} parent=0 // pred_fallthru
    _
  %v35 = vld [vmem:[%s2] sm:$0xf]
  %v36 = vld [vmem:[%s2 + $0x4] sm:$0xf]
  %v37 = vld [vmem:[%s2 + $0x8] sm:$0xf]
  %v38 = vld [vmem:[%s2 + $0xc] sm:$0xf]
  %v39 = vld [vmem:[%s4] sm:$0xf]
  %v40 = vld [vmem:[%s4 + $0x4] sm:$0xf]
  %v41 = vld [vmem:[%s4 + $0x8] sm:$0xf]
  %v42 = vld [vmem:[%s4 + $0xc] sm:$0xf]
  %v43 = vld [vmem:[%s5] sm:$0xf]
  %v44 = vld [vmem:[%s5 + $0x4] sm:$0xf]
  %v45 = vld [vmem:[%s5 + $0x8] sm:$0xf]
  %v46 = vld [vmem:[%s5 + $0xc] sm:$0xf]
  %v47 = vld [vmem:[%s0] sm:$0xff]
  %v48 = vld [vmem:[%s0 + $0x8] sm:$0xff]
  %v49 = vld [vmem:[%s0 + $0x10] sm:$0xff]
  %v50 = vld [vmem:[%s0 + $0x18] sm:$0xff]
  %v51 = vld [vmem:[%s0 + $0x20] sm:$0xff]
  %v52 = vld [vmem:[%s0 + $0x28] sm:$0xff]
  %v53 = vld [vmem:[%s0 + $0x30] sm:$0xff]
  %v54 = vld [vmem:[%s0 + $0x38] sm:$0xff]
  %v55 = vld [vmem:[%s1] sm:$0x1]
  %57 = vset.pattern.permute.xlu0 0
  %58 = vperm.xlu0 %57, %v47
  %v59 = vpop.permute.xlu0 %58
  %62 = vset.pattern.permute.xlu0 0
  %63 = vperm.xlu0 %62, %v48
  %v64 = vpop.permute.xlu0 %63
  %67 = vset.pattern.permute.xlu0 0
  %68 = vperm.xlu0 %67, %v49
  %v69 = vpop.permute.xlu0 %68
  %72 = vset.pattern.permute.xlu0 0
  %73 = vperm.xlu0 %72, %v50
  %v74 = vpop.permute.xlu0 %73
  %77 = vset.pattern.permute.xlu0 0
  %78 = vperm.xlu0 %77, %v51
  %v79 = vpop.permute.xlu0 %78
  %82 = vset.pattern.permute.xlu0 0
  %83 = vperm.xlu0 %82, %v52
  %v84 = vpop.permute.xlu0 %83
  %87 = vset.pattern.permute.xlu0 0
  %88 = vperm.xlu0 %87, %v53
  %v89 = vpop.permute.xlu0 %88
  %92 = vset.pattern.permute.xlu0 0
  %93 = vperm.xlu0 %92, %v54
  %v94 = vpop.permute.xlu0 %93
  %v97 = vlaneseq
  %v98 = vshrl.u32 %v97, 7
  %v99 = vsub.s32 0, %v98
  %v100 = vrot.slane %v55, %v99
  %v102 = vmul.f32 %v59, %v100
  %v103 = vmul.f32 %v64, %v100
  %v104 = vmul.f32 %v69, %v100
  %v105 = vmul.f32 %v74, %v100
  %v106 = vmul.f32 %v79, %v100
  %v107 = vmul.f32 %v84, %v100
  %v108 = vmul.f32 %v89, %v100
  %v109 = vmul.f32 %v94, %v100
  %v110 = vld [vmem:[%s3] sm:$0x1]
  %v112 = vlaneseq
  %v113 = vshrl.u32 %v112, 7
  %v114 = vsub.s32 0, %v113
  %v115 = vrot.slane %v110, %v114
  %v117 = vadd.f32 %v102, %v115
  %v118 = vadd.f32 %v103, %v115
  %v119 = vadd.f32 %v104, %v115
  %v120 = vadd.f32 %v105, %v115
  %v121 = vadd.f32 %v106, %v115
  %v122 = vadd.f32 %v107, %v115
  %v123 = vadd.f32 %v108, %v115
  %v124 = vadd.f32 %v109, %v115
  %v125 = vld [vmem:[%s6] sm:$0x1]
  %v127 = vlaneseq
  %v128 = vshrl.u32 %v127, 7
  %v129 = vsub.s32 0, %v128
  %v130 = vrot.slane %v125, %v129
  %v136 = vunpack.c.l.b16 %v35
  %v137 = vunpack.c.l.b16 %v36
  %v138 = vunpack.c.l.b16 %v37
  %v139 = vunpack.c.l.b16 %v38
  %v140 = vpack.c.b16 %v137, %v136
  %v141 = vpack.c.b16 %v139, %v138
  %vm144 = vcmask 261120
  %v146 = vsel %vm144, 0, 0
  %148 = vmatprep.subr.bf16.mxu0 0
  %149 = vmatpush1.bf16.msra.mxu0 0
  %150 = vmatprep.subr.bf16.mxu0 0
  %151 = vmatpush1.bf16.msra.mxu0 0
  %152 = vmatprep.subr.bf16.mxu0 0
  %153 = vmatpush1.bf16.msra.mxu0 0
  %154 = vmatprep.subr.bf16.mxu0 0
  %155 = vmatpush1.bf16.msra.mxu0 0
  %156 = vmatprep.subr.bf16.mxu0 0
  %157 = vmatpush1.bf16.msra.mxu0 0
  %158 = vmatprep.subr.bf16.mxu0 0
  %159 = vmatpush1.bf16.msra.mxu0 0
  %160 = vmatprep.subr.bf16.mxu0 0
  %161 = vmatpush1.bf16.msra.mxu0 %v141
  %162 = vmatprep.subr.bf16.mxu0 0
  %163 = vmatpush1.bf16.msra.mxu0 %v140
  %164 = vmatprep.subr.bf16.mxu0 0
  %165 = vmatpush2.bf16.msra.mxu0 0
  %166 = vmatprep.subr.bf16.mxu0 0
  %167 = vmatpush2.bf16.msra.mxu0 0
  %168 = vmatprep.subr.bf16.mxu0 0
  %169 = vmatpush2.bf16.msra.mxu0 0
  %170 = vmatprep.subr.bf16.mxu0 0
  %171 = vmatpush2.bf16.msra.mxu0 0
  %172 = vmatprep.subr.bf16.mxu0 0
  %173 = vmatpush2.bf16.msra.mxu0 0
  %174 = vmatprep.subr.bf16.mxu0 0
  %175 = vmatpush2.bf16.msra.mxu0 0
  %176 = vmatprep.subr.bf16.mxu0 0
  %177 = vmatpush2.bf16.msra.mxu0 0
  %178 = vmatprep.subr.bf16.mxu0 0
  %179 = vmatpush2.bf16.msra.mxu0 0
  %180 = vmatprep.mubr.bf16.mxu0 0
  %181 = vmatmul.mubr.bf16.gmra.mxu0 %v146
  %v182 = vpop.f32.mrf.mxu0
  %v183 = vadd.f32 0.0, %v182
  %v184 = vpop.f32.mrf.mxu0
  %v185 = vpop.f32.mrf.mxu0
  %v186 = vpop.f32.mrf.mxu0
  %187 = vdwg.mxu0
  %v188 = vadd.f32 %v117, %v183
  %v189 = vxor.u32 %v188, 2147483648
  %v190 = vmul.f32 %v189, 1.442695
  %v191 = vpow.pop %v190
  %v192 = vadd.f32 %v191, 1.0
  %v193 = vrcp.pop %v192
  %v194 = vmul.f32 1.0, %v193
  %v195 = vtanh.pop %v188
  %v196 = vmul.f32 %v194, 0.0
  %198 = vrot.lane.b32.xlu0 %v195, 32
  %v199 = vpop.permute.xlu0 %198
  %v201 = vmul.f32 %v194, %v199
  %203 = vrot.lane.b32.xlu0 %v201, 32
  %v204 = vpop.permute.xlu0 %203
  %v206 = vadd.f32 %v196, %v204
  %v207 = vtanh.pop %v206
  %209 = vrot.lane.b32.xlu0 %v207, 32
  %v210 = vpop.permute.xlu0 %209
  %v212 = vmul.f32 %v194, %v210
  %v213 = vpack.c.bf16 %v212, %v212
  %v218 = vunpack.c.l.b16 %v43
  %v219 = vunpack.c.l.b16 %v44
  %v220 = vunpack.c.l.b16 %v45
  %v221 = vunpack.c.l.b16 %v46
  %v222 = vpack.c.b16 %v219, %v218
  %v223 = vpack.c.b16 %v221, %v220
  %226 = vmatprep.subr.bf16.mxu0 0
  %227 = vmatpush1.bf16.msra.mxu0 0
  %228 = vmatprep.subr.bf16.mxu0 0
  %229 = vmatpush1.bf16.msra.mxu0 0
  %230 = vmatprep.subr.bf16.mxu0 0
  %231 = vmatpush1.bf16.msra.mxu0 0
  %232 = vmatprep.subr.bf16.mxu0 0
  %233 = vmatpush1.bf16.msra.mxu0 0
  %234 = vmatprep.subr.bf16.mxu0 0
  %235 = vmatpush1.bf16.msra.mxu0 0
  %236 = vmatprep.subr.bf16.mxu0 0
  %237 = vmatpush1.bf16.msra.mxu0 0
  %238 = vmatprep.subr.bf16.mxu0 0
  %239 = vmatpush1.bf16.msra.mxu0 %v223
  %240 = vmatprep.subr.bf16.mxu0 0
  %241 = vmatpush1.bf16.msra.mxu0 %v222
  %242 = vmatprep.subr.bf16.mxu0 0
  %243 = vmatpush2.bf16.msra.mxu0 0
  %244 = vmatprep.subr.bf16.mxu0 0
  %245 = vmatpush2.bf16.msra.mxu0 0
  %246 = vmatprep.subr.bf16.mxu0 0
  %247 = vmatpush2.bf16.msra.mxu0 0
  %248 = vmatprep.subr.bf16.mxu0 0
  %249 = vmatpush2.bf16.msra.mxu0 0
  %250 = vmatprep.subr.bf16.mxu0 0
  %251 = vmatpush2.bf16.msra.mxu0 0
  %252 = vmatprep.subr.bf16.mxu0 0
  %253 = vmatpush2.bf16.msra.mxu0 0
  %254 = vmatprep.subr.bf16.mxu0 0
  %255 = vmatpush2.bf16.msra.mxu0 0
  %256 = vmatprep.subr.bf16.mxu0 0
  %257 = vmatpush2.bf16.msra.mxu0 0
  %258 = vmatprep.mubr.bf16.mxu0 0
  %259 = vmatmul.mubr.bf16.gmra.mxu0 %v146
  %v260 = vpop.f32.mrf.mxu0
  %v261 = vadd.f32 0.0, %v260
  %v262 = vpop.f32.mrf.mxu0
  %v263 = vpop.f32.mrf.mxu0
  %v264 = vpop.f32.mrf.mxu0
  %265 = vdwg.mxu0
  %267 = vrot.lane.b32.xlu0 %v213, 64
  %v268 = vpop.permute.xlu0 %267
  %v273 = vunpack.c.l.b16 %v39
  %v274 = vunpack.c.l.b16 %v40
  %v275 = vunpack.c.l.b16 %v41
  %v276 = vunpack.c.l.b16 %v42
  %v277 = vpack.c.b16 %v274, %v273
  %v278 = vpack.c.b16 %v276, %v275
  %v282 = vsel %vm144, %v268, 0
  %284 = vmatprep.subr.bf16.mxu0 0
  %285 = vmatpush1.bf16.msra.mxu0 0
  %286 = vmatprep.subr.bf16.mxu0 0
  %287 = vmatpush1.bf16.msra.mxu0 0
  %288 = vmatprep.subr.bf16.mxu0 0
  %289 = vmatpush1.bf16.msra.mxu0 0
  %290 = vmatprep.subr.bf16.mxu0 0
  %291 = vmatpush1.bf16.msra.mxu0 0
  %292 = vmatprep.subr.bf16.mxu0 0
  %293 = vmatpush1.bf16.msra.mxu0 0
  %294 = vmatprep.subr.bf16.mxu0 0
  %295 = vmatpush1.bf16.msra.mxu0 0
  %296 = vmatprep.subr.bf16.mxu0 0
  %297 = vmatpush1.bf16.msra.mxu0 %v278
  %298 = vmatprep.subr.bf16.mxu0 0
  %299 = vmatpush1.bf16.msra.mxu0 %v277
  %300 = vmatprep.subr.bf16.mxu0 0
  %301 = vmatpush2.bf16.msra.mxu0 0
  %302 = vmatprep.subr.bf16.mxu0 0
  %303 = vmatpush2.bf16.msra.mxu0 0
  %304 = vmatprep.subr.bf16.mxu0 0
  %305 = vmatpush2.bf16.msra.mxu0 0
  %306 = vmatprep.subr.bf16.mxu0 0
  %307 = vmatpush2.bf16.msra.mxu0 0
  %308 = vmatprep.subr.bf16.mxu0 0
  %309 = vmatpush2.bf16.msra.mxu0 0
  %310 = vmatprep.subr.bf16.mxu0 0
  %311 = vmatpush2.bf16.msra.mxu0 0
  %312 = vmatprep.subr.bf16.mxu0 0
  %313 = vmatpush2.bf16.msra.mxu0 0
  %314 = vmatprep.subr.bf16.mxu0 0
  %315 = vmatpush2.bf16.msra.mxu0 0
  %316 = vmatprep.mubr.bf16.mxu0 0
  %317 = vmatmul.mubr.bf16.gmra.mxu0 %v282
  %v318 = vpop.f32.mrf.mxu0
  %v319 = vadd.f32 %v261, %v318
  %v320 = vpop.f32.mrf.mxu0
  %v321 = vpop.f32.mrf.mxu0
  %v322 = vpop.f32.mrf.mxu0
  %323 = vdwg.mxu0
  %v324 = vadd.f32 %v319, %v130
  %v325 = vxor.u32 %v324, 2147483648
  %v326 = vmul.f32 %v325, 1.442695
  %v327 = vpow.pop %v326
  %v328 = vadd.f32 %v327, 1.0
  %v329 = vrcp.pop %v328
  %v330 = vmul.f32 1.0, %v329
  %v331 = vtanh.pop %v324
  %v332 = vmul.f32 %v330, 0.0
  %334 = vrot.lane.b32.xlu0 %v331, 32
  %v335 = vpop.permute.xlu0 %334
  %v337 = vmul.f32 %v330, %v335
  %339 = vrot.lane.b32.xlu0 %v337, 32
  %v340 = vpop.permute.xlu0 %339
  %v342 = vadd.f32 %v332, %v340
  %v343 = vtanh.pop %v342
  %345 = vrot.lane.b32.xlu0 %v343, 32
  %v346 = vpop.permute.xlu0 %345
  %v348 = vmul.f32 %v330, %v346
  %349 = vmatprep.subr.bf16.mxu0 0
  %350 = vmatpush1.bf16.msra.mxu0 0
  %351 = vmatprep.subr.bf16.mxu0 0
  %352 = vmatpush1.bf16.msra.mxu0 0
  %353 = vmatprep.subr.bf16.mxu0 0
  %354 = vmatpush1.bf16.msra.mxu0 0
  %355 = vmatprep.subr.bf16.mxu0 0
  %356 = vmatpush1.bf16.msra.mxu0 0
  %357 = vmatprep.subr.bf16.mxu0 0
  %358 = vmatpush1.bf16.msra.mxu0 0
  %359 = vmatprep.subr.bf16.mxu0 0
  %360 = vmatpush1.bf16.msra.mxu0 0
  %361 = vmatprep.subr.bf16.mxu0 0
  %362 = vmatpush1.bf16.msra.mxu0 %v141
  %363 = vmatprep.subr.bf16.mxu0 0
  %364 = vmatpush1.bf16.msra.mxu0 %v140
  %365 = vmatprep.subr.bf16.mxu0 0
  %366 = vmatpush2.bf16.msra.mxu0 0
  %367 = vmatprep.subr.bf16.mxu0 0
  %368 = vmatpush2.bf16.msra.mxu0 0
  %369 = vmatprep.subr.bf16.mxu0 0
  %370 = vmatpush2.bf16.msra.mxu0 0
  %371 = vmatprep.subr.bf16.mxu0 0
  %372 = vmatpush2.bf16.msra.mxu0 0
  %373 = vmatprep.subr.bf16.mxu0 0
  %374 = vmatpush2.bf16.msra.mxu0 0
  %375 = vmatprep.subr.bf16.mxu0 0
  %376 = vmatpush2.bf16.msra.mxu0 0
  %377 = vmatprep.subr.bf16.mxu0 0
  %378 = vmatpush2.bf16.msra.mxu0 0
  %379 = vmatprep.subr.bf16.mxu0 0
  %380 = vmatpush2.bf16.msra.mxu0 0
  %381 = vmatprep.mubr.bf16.mxu0 0
  %382 = vmatmul.mubr.bf16.gmra.mxu0 %v282
  %v383 = vpop.f32.mrf.mxu0
  %v384 = vadd.f32 0.0, %v383
  %v385 = vpop.f32.mrf.mxu0
  %v386 = vpop.f32.mrf.mxu0
  %v387 = vpop.f32.mrf.mxu0
  %388 = vdwg.mxu0
  %v389 = vadd.f32 %v118, %v384
  %v390 = vxor.u32 %v389, 2147483648
  %v391 = vmul.f32 %v390, 1.442695
  %v392 = vpow.pop %v391
  %v393 = vadd.f32 %v392, 1.0
  %v394 = vrcp.pop %v393
  %v395 = vmul.f32 1.0, %v394
  %v396 = vtanh.pop %v389
  %v397 = vmul.f32 %v395, %v206
  %399 = vrot.lane.b32.xlu0 %v396, 32
  %v400 = vpop.permute.xlu0 %399
  %v402 = vmul.f32 %v395, %v400
  %404 = vrot.lane.b32.xlu0 %v402, 32
  %v405 = vpop.permute.xlu0 %404
  %v407 = vadd.f32 %v397, %v405
  %v408 = vtanh.pop %v407
  %410 = vrot.lane.b32.xlu0 %v408, 32
  %v411 = vpop.permute.xlu0 %410
  %v413 = vmul.f32 %v395, %v411
  %v414 = vpack.c.bf16 %v413, %v413
  %v415 = vpack.c.bf16 %v348, %v348
  %417 = vrot.lane.b32.xlu0 %v415, 64
  %v418 = vpop.permute.xlu0 %417
  %v420 = vsel %vm144, %v418, 0
  %422 = vmatprep.subr.bf16.mxu0 0
  %423 = vmatpush1.bf16.msra.mxu0 0
  %424 = vmatprep.subr.bf16.mxu0 0
  %425 = vmatpush1.bf16.msra.mxu0 0
  %426 = vmatprep.subr.bf16.mxu0 0
  %427 = vmatpush1.bf16.msra.mxu0 0
  %428 = vmatprep.subr.bf16.mxu0 0
  %429 = vmatpush1.bf16.msra.mxu0 0
  %430 = vmatprep.subr.bf16.mxu0 0
  %431 = vmatpush1.bf16.msra.mxu0 0
  %432 = vmatprep.subr.bf16.mxu0 0
  %433 = vmatpush1.bf16.msra.mxu0 0
  %434 = vmatprep.subr.bf16.mxu0 0
  %435 = vmatpush1.bf16.msra.mxu0 %v223
  %436 = vmatprep.subr.bf16.mxu0 0
  %437 = vmatpush1.bf16.msra.mxu0 %v222
  %438 = vmatprep.subr.bf16.mxu0 0
  %439 = vmatpush2.bf16.msra.mxu0 0
  %440 = vmatprep.subr.bf16.mxu0 0
  %441 = vmatpush2.bf16.msra.mxu0 0
  %442 = vmatprep.subr.bf16.mxu0 0
  %443 = vmatpush2.bf16.msra.mxu0 0
  %444 = vmatprep.subr.bf16.mxu0 0
  %445 = vmatpush2.bf16.msra.mxu0 0
  %446 = vmatprep.subr.bf16.mxu0 0
  %447 = vmatpush2.bf16.msra.mxu0 0
  %448 = vmatprep.subr.bf16.mxu0 0
  %449 = vmatpush2.bf16.msra.mxu0 0
  %450 = vmatprep.subr.bf16.mxu0 0
  %451 = vmatpush2.bf16.msra.mxu0 0
  %452 = vmatprep.subr.bf16.mxu0 0
  %453 = vmatpush2.bf16.msra.mxu0 0
  %454 = vmatprep.mubr.bf16.mxu0 0
  %455 = vmatmul.mubr.bf16.gmra.mxu0 %v420
  %v456 = vpop.f32.mrf.mxu0
  %v457 = vadd.f32 0.0, %v456
  %v458 = vpop.f32.mrf.mxu0
  %v459 = vpop.f32.mrf.mxu0
  %v460 = vpop.f32.mrf.mxu0
  %461 = vdwg.mxu0
  %463 = vrot.lane.b32.xlu0 %v414, 64
  %v464 = vpop.permute.xlu0 %463
  %v466 = vsel %vm144, %v464, 0
  %468 = vmatprep.subr.bf16.mxu0 0
  %469 = vmatpush1.bf16.msra.mxu0 0
  %470 = vmatprep.subr.bf16.mxu0 0
  %471 = vmatpush1.bf16.msra.mxu0 0
  %472 = vmatprep.subr.bf16.mxu0 0
  %473 = vmatpush1.bf16.msra.mxu0 0
  %474 = vmatprep.subr.bf16.mxu0 0
  %475 = vmatpush1.bf16.msra.mxu0 0
  %476 = vmatprep.subr.bf16.mxu0 0
  %477 = vmatpush1.bf16.msra.mxu0 0
  %478 = vmatprep.subr.bf16.mxu0 0
  %479 = vmatpush1.bf16.msra.mxu0 0
  %480 = vmatprep.subr.bf16.mxu0 0
  %481 = vmatpush1.bf16.msra.mxu0 %v278
  %482 = vmatprep.subr.bf16.mxu0 0
  %483 = vmatpush1.bf16.msra.mxu0 %v277
  %484 = vmatprep.subr.bf16.mxu0 0
  %485 = vmatpush2.bf16.msra.mxu0 0
  %486 = vmatprep.subr.bf16.mxu0 0
  %487 = vmatpush2.bf16.msra.mxu0 0
  %488 = vmatprep.subr.bf16.mxu0 0
  %489 = vmatpush2.bf16.msra.mxu0 0
  %490 = vmatprep.subr.bf16.mxu0 0
  %491 = vmatpush2.bf16.msra.mxu0 0
  %492 = vmatprep.subr.bf16.mxu0 0
  %493 = vmatpush2.bf16.msra.mxu0 0
  %494 = vmatprep.subr.bf16.mxu0 0
  %495 = vmatpush2.bf16.msra.mxu0 0
  %496 = vmatprep.subr.bf16.mxu0 0
  %497 = vmatpush2.bf16.msra.mxu0 0
  %498 = vmatprep.subr.bf16.mxu0 0
  %499 = vmatpush2.bf16.msra.mxu0 0
  %500 = vmatprep.mubr.bf16.mxu0 0
  %501 = vmatmul.mubr.bf16.gmra.mxu0 %v466
  %v502 = vpop.f32.mrf.mxu0
  %v503 = vadd.f32 %v457, %v502
  %v504 = vpop.f32.mrf.mxu0
  %v505 = vpop.f32.mrf.mxu0
  %v506 = vpop.f32.mrf.mxu0
  %507 = vdwg.mxu0
  %v508 = vadd.f32 %v503, %v130
  %v509 = vxor.u32 %v508, 2147483648
  %v510 = vmul.f32 %v509, 1.442695
  %v511 = vpow.pop %v510
  %v512 = vadd.f32 %v511, 1.0
  %v513 = vrcp.pop %v512
  %v514 = vmul.f32 1.0, %v513
  %v515 = vtanh.pop %v508
  %v516 = vmul.f32 %v514, %v342
  %518 = vrot.lane.b32.xlu0 %v515, 32
  %v519 = vpop.permute.xlu0 %518
  %v521 = vmul.f32 %v514, %v519
  %523 = vrot.lane.b32.xlu0 %v521, 32
  %v524 = vpop.permute.xlu0 %523
  %v526 = vadd.f32 %v516, %v524
  %v527 = vtanh.pop %v526
  %529 = vrot.lane.b32.xlu0 %v527, 32
  %v530 = vpop.permute.xlu0 %529
  %v532 = vmul.f32 %v514, %v530
  %533 = vmatprep.subr.bf16.mxu0 0
  %534 = vmatpush1.bf16.msra.mxu0 0
  %535 = vmatprep.subr.bf16.mxu0 0
  %536 = vmatpush1.bf16.msra.mxu0 0
  %537 = vmatprep.subr.bf16.mxu0 0
  %538 = vmatpush1.bf16.msra.mxu0 0
  %539 = vmatprep.subr.bf16.mxu0 0
  %540 = vmatpush1.bf16.msra.mxu0 0
  %541 = vmatprep.subr.bf16.mxu0 0
  %542 = vmatpush1.bf16.msra.mxu0 0
  %543 = vmatprep.subr.bf16.mxu0 0
  %544 = vmatpush1.bf16.msra.mxu0 0
  %545 = vmatprep.subr.bf16.mxu0 0
  %546 = vmatpush1.bf16.msra.mxu0 %v141
  %547 = vmatprep.subr.bf16.mxu0 0
  %548 = vmatpush1.bf16.msra.mxu0 %v140
  %549 = vmatprep.subr.bf16.mxu0 0
  %550 = vmatpush2.bf16.msra.mxu0 0
  %551 = vmatprep.subr.bf16.mxu0 0
  %552 = vmatpush2.bf16.msra.mxu0 0
  %553 = vmatprep.subr.bf16.mxu0 0
  %554 = vmatpush2.bf16.msra.mxu0 0
  %555 = vmatprep.subr.bf16.mxu0 0
  %556 = vmatpush2.bf16.msra.mxu0 0
  %557 = vmatprep.subr.bf16.mxu0 0
  %558 = vmatpush2.bf16.msra.mxu0 0
  %559 = vmatprep.subr.bf16.mxu0 0
  %560 = vmatpush2.bf16.msra.mxu0 0
  %561 = vmatprep.subr.bf16.mxu0 0
  %562 = vmatpush2.bf16.msra.mxu0 0
  %563 = vmatprep.subr.bf16.mxu0 0
  %564 = vmatpush2.bf16.msra.mxu0 0
  %565 = vmatprep.mubr.bf16.mxu0 0
  %566 = vmatmul.mubr.bf16.gmra.mxu0 %v466
  %v567 = vpop.f32.mrf.mxu0
  %v568 = vadd.f32 0.0, %v567
  %v569 = vpop.f32.mrf.mxu0
  %v570 = vpop.f32.mrf.mxu0
  %v571 = vpop.f32.mrf.mxu0
  %572 = vdwg.mxu0
  %v573 = vadd.f32 %v119, %v568
  %v574 = vxor.u32 %v573, 2147483648
  %v575 = vmul.f32 %v574, 1.442695
  %v576 = vpow.pop %v575
  %v577 = vadd.f32 %v576, 1.0
  %v578 = vrcp.pop %v577
  %v579 = vmul.f32 1.0, %v578
  %v580 = vtanh.pop %v573
  %v581 = vmul.f32 %v579, %v407
  %583 = vrot.lane.b32.xlu0 %v580, 32
  %v584 = vpop.permute.xlu0 %583
  %v586 = vmul.f32 %v579, %v584
  %588 = vrot.lane.b32.xlu0 %v586, 32
  %v589 = vpop.permute.xlu0 %588
  %v591 = vadd.f32 %v581, %v589
  %v592 = vtanh.pop %v591
  %594 = vrot.lane.b32.xlu0 %v592, 32
  %v595 = vpop.permute.xlu0 %594
  %v597 = vmul.f32 %v579, %v595
  %v598 = vpack.c.bf16 %v597, %v597
  %v599 = vpack.c.bf16 %v532, %v532
  %601 = vrot.lane.b32.xlu0 %v599, 64
  %v602 = vpop.permute.xlu0 %601
  %v604 = vsel %vm144, %v602, 0
  %606 = vmatprep.subr.bf16.mxu0 0
  %607 = vmatpush1.bf16.msra.mxu0 0
  %608 = vmatprep.subr.bf16.mxu0 0
  %609 = vmatpush1.bf16.msra.mxu0 0
  %610 = vmatprep.subr.bf16.mxu0 0
  %611 = vmatpush1.bf16.msra.mxu0 0
  %612 = vmatprep.subr.bf16.mxu0 0
  %613 = vmatpush1.bf16.msra.mxu0 0
  %614 = vmatprep.subr.bf16.mxu0 0
  %615 = vmatpush1.bf16.msra.mxu0 0
  %616 = vmatprep.subr.bf16.mxu0 0
  %617 = vmatpush1.bf16.msra.mxu0 0
  %618 = vmatprep.subr.bf16.mxu0 0
  %619 = vmatpush1.bf16.msra.mxu0 %v223
  %620 = vmatprep.subr.bf16.mxu0 0
  %621 = vmatpush1.bf16.msra.mxu0 %v222
  %622 = vmatprep.subr.bf16.mxu0 0
  %623 = vmatpush2.bf16.msra.mxu0 0
  %624 = vmatprep.subr.bf16.mxu0 0
  %625 = vmatpush2.bf16.msra.mxu0 0
  %626 = vmatprep.subr.bf16.mxu0 0
  %627 = vmatpush2.bf16.msra.mxu0 0
  %628 = vmatprep.subr.bf16.mxu0 0
  %629 = vmatpush2.bf16.msra.mxu0 0
  %630 = vmatprep.subr.bf16.mxu0 0
  %631 = vmatpush2.bf16.msra.mxu0 0
  %632 = vmatprep.subr.bf16.mxu0 0
  %633 = vmatpush2.bf16.msra.mxu0 0
  %634 = vmatprep.subr.bf16.mxu0 0
  %635 = vmatpush2.bf16.msra.mxu0 0
  %636 = vmatprep.subr.bf16.mxu0 0
  %637 = vmatpush2.bf16.msra.mxu0 0
  %638 = vmatprep.mubr.bf16.mxu0 0
  %639 = vmatmul.mubr.bf16.gmra.mxu0 %v604
  %v640 = vpop.f32.mrf.mxu0
  %v641 = vadd.f32 0.0, %v640
  %v642 = vpop.f32.mrf.mxu0
  %v643 = vpop.f32.mrf.mxu0
  %v644 = vpop.f32.mrf.mxu0
  %645 = vdwg.mxu0
  %647 = vrot.lane.b32.xlu0 %v598, 64
  %v648 = vpop.permute.xlu0 %647
  %v650 = vsel %vm144, %v648, 0
  %652 = vmatprep.subr.bf16.mxu0 0
  %653 = vmatpush1.bf16.msra.mxu0 0
  %654 = vmatprep.subr.bf16.mxu0 0
  %655 = vmatpush1.bf16.msra.mxu0 0
  %656 = vmatprep.subr.bf16.mxu0 0
  %657 = vmatpush1.bf16.msra.mxu0 0
  %658 = vmatprep.subr.bf16.mxu0 0
  %659 = vmatpush1.bf16.msra.mxu0 0
  %660 = vmatprep.subr.bf16.mxu0 0
  %661 = vmatpush1.bf16.msra.mxu0 0
  %662 = vmatprep.subr.bf16.mxu0 0
  %663 = vmatpush1.bf16.msra.mxu0 0
  %664 = vmatprep.subr.bf16.mxu0 0
  %665 = vmatpush1.bf16.msra.mxu0 %v278
  %666 = vmatprep.subr.bf16.mxu0 0
  %667 = vmatpush1.bf16.msra.mxu0 %v277
  %668 = vmatprep.subr.bf16.mxu0 0
  %669 = vmatpush2.bf16.msra.mxu0 0
  %670 = vmatprep.subr.bf16.mxu0 0
  %671 = vmatpush2.bf16.msra.mxu0 0
  %672 = vmatprep.subr.bf16.mxu0 0
  %673 = vmatpush2.bf16.msra.mxu0 0
  %674 = vmatprep.subr.bf16.mxu0 0
  %675 = vmatpush2.bf16.msra.mxu0 0
  %676 = vmatprep.subr.bf16.mxu0 0
  %677 = vmatpush2.bf16.msra.mxu0 0
  %678 = vmatprep.subr.bf16.mxu0 0
  %679 = vmatpush2.bf16.msra.mxu0 0
  %680 = vmatprep.subr.bf16.mxu0 0
  %681 = vmatpush2.bf16.msra.mxu0 0
  %682 = vmatprep.subr.bf16.mxu0 0
  %683 = vmatpush2.bf16.msra.mxu0 0
  %684 = vmatprep.mubr.bf16.mxu0 0
  %685 = vmatmul.mubr.bf16.gmra.mxu0 %v650
  %v686 = vpop.f32.mrf.mxu0
  %v687 = vadd.f32 %v641, %v686
  %v688 = vpop.f32.mrf.mxu0
  %v689 = vpop.f32.mrf.mxu0
  %v690 = vpop.f32.mrf.mxu0
  %691 = vdwg.mxu0
  %v692 = vadd.f32 %v687, %v130
  %v693 = vxor.u32 %v692, 2147483648
  %v694 = vmul.f32 %v693, 1.442695
  %v695 = vpow.pop %v694
  %v696 = vadd.f32 %v695, 1.0
  %v697 = vrcp.pop %v696
  %v698 = vmul.f32 1.0, %v697
  %v699 = vtanh.pop %v692
  %v700 = vmul.f32 %v698, %v526
  %702 = vrot.lane.b32.xlu0 %v699, 32
  %v703 = vpop.permute.xlu0 %702
  %v705 = vmul.f32 %v698, %v703
  %707 = vrot.lane.b32.xlu0 %v705, 32
  %v708 = vpop.permute.xlu0 %707
  %v710 = vadd.f32 %v700, %v708
  %v711 = vtanh.pop %v710
  %713 = vrot.lane.b32.xlu0 %v711, 32
  %v714 = vpop.permute.xlu0 %713
  %v716 = vmul.f32 %v698, %v714
  %717 = vmatprep.subr.bf16.mxu0 0
  %718 = vmatpush1.bf16.msra.mxu0 0
  %719 = vmatprep.subr.bf16.mxu0 0
  %720 = vmatpush1.bf16.msra.mxu0 0
  %721 = vmatprep.subr.bf16.mxu0 0
  %722 = vmatpush1.bf16.msra.mxu0 0
  %723 = vmatprep.subr.bf16.mxu0 0
  %724 = vmatpush1.bf16.msra.mxu0 0
  %725 = vmatprep.subr.bf16.mxu0 0
  %726 = vmatpush1.bf16.msra.mxu0 0
  %727 = vmatprep.subr.bf16.mxu0 0
  %728 = vmatpush1.bf16.msra.mxu0 0
  %729 = vmatprep.subr.bf16.mxu0 0
  %730 = vmatpush1.bf16.msra.mxu0 %v141
  %731 = vmatprep.subr.bf16.mxu0 0
  %732 = vmatpush1.bf16.msra.mxu0 %v140
  %733 = vmatprep.subr.bf16.mxu0 0
  %734 = vmatpush2.bf16.msra.mxu0 0
  %735 = vmatprep.subr.bf16.mxu0 0
  %736 = vmatpush2.bf16.msra.mxu0 0
  %737 = vmatprep.subr.bf16.mxu0 0
  %738 = vmatpush2.bf16.msra.mxu0 0
  %739 = vmatprep.subr.bf16.mxu0 0
  %740 = vmatpush2.bf16.msra.mxu0 0
  %741 = vmatprep.subr.bf16.mxu0 0
  %742 = vmatpush2.bf16.msra.mxu0 0
  %743 = vmatprep.subr.bf16.mxu0 0
  %744 = vmatpush2.bf16.msra.mxu0 0
  %745 = vmatprep.subr.bf16.mxu0 0
  %746 = vmatpush2.bf16.msra.mxu0 0
  %747 = vmatprep.subr.bf16.mxu0 0
  %748 = vmatpush2.bf16.msra.mxu0 0
  %749 = vmatprep.mubr.bf16.mxu0 0
  %750 = vmatmul.mubr.bf16.gmra.mxu0 %v650
  %v751 = vpop.f32.mrf.mxu0
  %v752 = vadd.f32 0.0, %v751
  %v753 = vpop.f32.mrf.mxu0
  %v754 = vpop.f32.mrf.mxu0
  %v755 = vpop.f32.mrf.mxu0
  %756 = vdwg.mxu0
  %v757 = vadd.f32 %v120, %v752
  %v758 = vxor.u32 %v757, 2147483648
  %v759 = vmul.f32 %v758, 1.442695
  %v760 = vpow.pop %v759
  %v761 = vadd.f32 %v760, 1.0
  %v762 = vrcp.pop %v761
  %v763 = vmul.f32 1.0, %v762
  %v764 = vtanh.pop %v757
  %v765 = vmul.f32 %v763, %v591
  %767 = vrot.lane.b32.xlu0 %v764, 32
  %v768 = vpop.permute.xlu0 %767
  %v770 = vmul.f32 %v763, %v768
  %772 = vrot.lane.b32.xlu0 %v770, 32
  %v773 = vpop.permute.xlu0 %772
  %v775 = vadd.f32 %v765, %v773
  %v776 = vtanh.pop %v775
  %778 = vrot.lane.b32.xlu0 %v776, 32
  %v779 = vpop.permute.xlu0 %778
  %v781 = vmul.f32 %v763, %v779
  %v782 = vpack.c.bf16 %v781, %v781
  %v783 = vpack.c.bf16 %v716, %v716
  %785 = vrot.lane.b32.xlu0 %v783, 64
  %v786 = vpop.permute.xlu0 %785
  %v788 = vsel %vm144, %v786, 0
  %790 = vmatprep.subr.bf16.mxu0 0
  %791 = vmatpush1.bf16.msra.mxu0 0
  %792 = vmatprep.subr.bf16.mxu0 0
  %793 = vmatpush1.bf16.msra.mxu0 0
  %794 = vmatprep.subr.bf16.mxu0 0
  %795 = vmatpush1.bf16.msra.mxu0 0
  %796 = vmatprep.subr.bf16.mxu0 0
  %797 = vmatpush1.bf16.msra.mxu0 0
  %798 = vmatprep.subr.bf16.mxu0 0
  %799 = vmatpush1.bf16.msra.mxu0 0
  %800 = vmatprep.subr.bf16.mxu0 0
  %801 = vmatpush1.bf16.msra.mxu0 0
  %802 = vmatprep.subr.bf16.mxu0 0
  %803 = vmatpush1.bf16.msra.mxu0 %v223
  %804 = vmatprep.subr.bf16.mxu0 0
  %805 = vmatpush1.bf16.msra.mxu0 %v222
  %806 = vmatprep.subr.bf16.mxu0 0
  %807 = vmatpush2.bf16.msra.mxu0 0
  %808 = vmatprep.subr.bf16.mxu0 0
  %809 = vmatpush2.bf16.msra.mxu0 0
  %810 = vmatprep.subr.bf16.mxu0 0
  %811 = vmatpush2.bf16.msra.mxu0 0
  %812 = vmatprep.subr.bf16.mxu0 0
  %813 = vmatpush2.bf16.msra.mxu0 0
  %814 = vmatprep.subr.bf16.mxu0 0
  %815 = vmatpush2.bf16.msra.mxu0 0
  %816 = vmatprep.subr.bf16.mxu0 0
  %817 = vmatpush2.bf16.msra.mxu0 0
  %818 = vmatprep.subr.bf16.mxu0 0
  %819 = vmatpush2.bf16.msra.mxu0 0
  %820 = vmatprep.subr.bf16.mxu0 0
  %821 = vmatpush2.bf16.msra.mxu0 0
  %822 = vmatprep.mubr.bf16.mxu0 0
  %823 = vmatmul.mubr.bf16.gmra.mxu0 %v788
  %v824 = vpop.f32.mrf.mxu0
  %v825 = vadd.f32 0.0, %v824
  %v826 = vpop.f32.mrf.mxu0
  %v827 = vpop.f32.mrf.mxu0
  %v828 = vpop.f32.mrf.mxu0
  %829 = vdwg.mxu0
  %831 = vrot.lane.b32.xlu0 %v782, 64
  %v832 = vpop.permute.xlu0 %831
  %v834 = vsel %vm144, %v832, 0
  %836 = vmatprep.subr.bf16.mxu0 0
  %837 = vmatpush1.bf16.msra.mxu0 0
  %838 = vmatprep.subr.bf16.mxu0 0
  %839 = vmatpush1.bf16.msra.mxu0 0
  %840 = vmatprep.subr.bf16.mxu0 0
  %841 = vmatpush1.bf16.msra.mxu0 0
  %842 = vmatprep.subr.bf16.mxu0 0
  %843 = vmatpush1.bf16.msra.mxu0 0
  %844 = vmatprep.subr.bf16.mxu0 0
  %845 = vmatpush1.bf16.msra.mxu0 0
  %846 = vmatprep.subr.bf16.mxu0 0
  %847 = vmatpush1.bf16.msra.mxu0 0
  %848 = vmatprep.subr.bf16.mxu0 0
  %849 = vmatpush1.bf16.msra.mxu0 %v278
  %850 = vmatprep.subr.bf16.mxu0 0
  %851 = vmatpush1.bf16.msra.mxu0 %v277
  %852 = vmatprep.subr.bf16.mxu0 0
  %853 = vmatpush2.bf16.msra.mxu0 0
  %854 = vmatprep.subr.bf16.mxu0 0
  %855 = vmatpush2.bf16.msra.mxu0 0
  %856 = vmatprep.subr.bf16.mxu0 0
  %857 = vmatpush2.bf16.msra.mxu0 0
  %858 = vmatprep.subr.bf16.mxu0 0
  %859 = vmatpush2.bf16.msra.mxu0 0
  %860 = vmatprep.subr.bf16.mxu0 0
  %861 = vmatpush2.bf16.msra.mxu0 0
  %862 = vmatprep.subr.bf16.mxu0 0
  %863 = vmatpush2.bf16.msra.mxu0 0
  %864 = vmatprep.subr.bf16.mxu0 0
  %865 = vmatpush2.bf16.msra.mxu0 0
  %866 = vmatprep.subr.bf16.mxu0 0
  %867 = vmatpush2.bf16.msra.mxu0 0
  %868 = vmatprep.mubr.bf16.mxu0 0
  %869 = vmatmul.mubr.bf16.gmra.mxu0 %v834
  %v870 = vpop.f32.mrf.mxu0
  %v871 = vadd.f32 %v825, %v870
  %v872 = vpop.f32.mrf.mxu0
  %v873 = vpop.f32.mrf.mxu0
  %v874 = vpop.f32.mrf.mxu0
  %875 = vdwg.mxu0
  %v876 = vadd.f32 %v871, %v130
  %v877 = vxor.u32 %v876, 2147483648
  %v878 = vmul.f32 %v877, 1.442695
  %v879 = vpow.pop %v878
  %v880 = vadd.f32 %v879, 1.0
  %v881 = vrcp.pop %v880
  %v882 = vmul.f32 1.0, %v881
  %v883 = vtanh.pop %v876
  %v884 = vmul.f32 %v882, %v710
  %886 = vrot.lane.b32.xlu0 %v883, 32
  %v887 = vpop.permute.xlu0 %886
  %v889 = vmul.f32 %v882, %v887
  %891 = vrot.lane.b32.xlu0 %v889, 32
  %v892 = vpop.permute.xlu0 %891
  %v894 = vadd.f32 %v884, %v892
  %v895 = vtanh.pop %v894
  %897 = vrot.lane.b32.xlu0 %v895, 32
  %v898 = vpop.permute.xlu0 %897
  %v900 = vmul.f32 %v882, %v898
  %901 = vmatprep.subr.bf16.mxu0 0
  %902 = vmatpush1.bf16.msra.mxu0 0
  %903 = vmatprep.subr.bf16.mxu0 0
  %904 = vmatpush1.bf16.msra.mxu0 0
  %905 = vmatprep.subr.bf16.mxu0 0
  %906 = vmatpush1.bf16.msra.mxu0 0
  %907 = vmatprep.subr.bf16.mxu0 0
  %908 = vmatpush1.bf16.msra.mxu0 0
  %909 = vmatprep.subr.bf16.mxu0 0
  %910 = vmatpush1.bf16.msra.mxu0 0
  %911 = vmatprep.subr.bf16.mxu0 0
  %912 = vmatpush1.bf16.msra.mxu0 0
  %913 = vmatprep.subr.bf16.mxu0 0
  %914 = vmatpush1.bf16.msra.mxu0 %v141
  %915 = vmatprep.subr.bf16.mxu0 0
  %916 = vmatpush1.bf16.msra.mxu0 %v140
  %917 = vmatprep.subr.bf16.mxu0 0
  %918 = vmatpush2.bf16.msra.mxu0 0
  %919 = vmatprep.subr.bf16.mxu0 0
  %920 = vmatpush2.bf16.msra.mxu0 0
  %921 = vmatprep.subr.bf16.mxu0 0
  %922 = vmatpush2.bf16.msra.mxu0 0
  %923 = vmatprep.subr.bf16.mxu0 0
  %924 = vmatpush2.bf16.msra.mxu0 0
  %925 = vmatprep.subr.bf16.mxu0 0
  %926 = vmatpush2.bf16.msra.mxu0 0
  %927 = vmatprep.subr.bf16.mxu0 0
  %928 = vmatpush2.bf16.msra.mxu0 0
  %929 = vmatprep.subr.bf16.mxu0 0
  %930 = vmatpush2.bf16.msra.mxu0 0
  %931 = vmatprep.subr.bf16.mxu0 0
  %932 = vmatpush2.bf16.msra.mxu0 0
  %933 = vmatprep.mubr.bf16.mxu0 0
  %934 = vmatmul.mubr.bf16.gmra.mxu0 %v834
  %v935 = vpop.f32.mrf.mxu0
  %v936 = vadd.f32 0.0, %v935
  %v937 = vpop.f32.mrf.mxu0
  %v938 = vpop.f32.mrf.mxu0
  %v939 = vpop.f32.mrf.mxu0
  %940 = vdwg.mxu0
  %v941 = vadd.f32 %v121, %v936
  %v942 = vxor.u32 %v941, 2147483648
  %v943 = vmul.f32 %v942, 1.442695
  %v944 = vpow.pop %v943
  %v945 = vadd.f32 %v944, 1.0
  %v946 = vrcp.pop %v945
  %v947 = vmul.f32 1.0, %v946
  %v948 = vtanh.pop %v941
  %v949 = vmul.f32 %v947, %v775
  %951 = vrot.lane.b32.xlu0 %v948, 32
  %v952 = vpop.permute.xlu0 %951
  %v954 = vmul.f32 %v947, %v952
  %956 = vrot.lane.b32.xlu0 %v954, 32
  %v957 = vpop.permute.xlu0 %956
  %v959 = vadd.f32 %v949, %v957
  %v960 = vtanh.pop %v959
  %962 = vrot.lane.b32.xlu0 %v960, 32
  %v963 = vpop.permute.xlu0 %962
  %v965 = vmul.f32 %v947, %v963
  %v966 = vpack.c.bf16 %v965, %v965
  %v967 = vpack.c.bf16 %v900, %v900
  %969 = vrot.lane.b32.xlu0 %v967, 64
  %v970 = vpop.permute.xlu0 %969
  %v972 = vsel %vm144, %v970, 0
  %974 = vmatprep.subr.bf16.mxu0 0
  %975 = vmatpush1.bf16.msra.mxu0 0
  %976 = vmatprep.subr.bf16.mxu0 0
  %977 = vmatpush1.bf16.msra.mxu0 0
  %978 = vmatprep.subr.bf16.mxu0 0
  %979 = vmatpush1.bf16.msra.mxu0 0
  %980 = vmatprep.subr.bf16.mxu0 0
  %981 = vmatpush1.bf16.msra.mxu0 0
  %982 = vmatprep.subr.bf16.mxu0 0
  %983 = vmatpush1.bf16.msra.mxu0 0
  %984 = vmatprep.subr.bf16.mxu0 0
  %985 = vmatpush1.bf16.msra.mxu0 0
  %986 = vmatprep.subr.bf16.mxu0 0
  %987 = vmatpush1.bf16.msra.mxu0 %v223
  %988 = vmatprep.subr.bf16.mxu0 0
  %989 = vmatpush1.bf16.msra.mxu0 %v222
  %990 = vmatprep.subr.bf16.mxu0 0
  %991 = vmatpush2.bf16.msra.mxu0 0
  %992 = vmatprep.subr.bf16.mxu0 0
  %993 = vmatpush2.bf16.msra.mxu0 0
  %994 = vmatprep.subr.bf16.mxu0 0
  %995 = vmatpush2.bf16.msra.mxu0 0
  %996 = vmatprep.subr.bf16.mxu0 0
  %997 = vmatpush2.bf16.msra.mxu0 0
  %998 = vmatprep.subr.bf16.mxu0 0
  %999 = vmatpush2.bf16.msra.mxu0 0
  %1000 = vmatprep.subr.bf16.mxu0 0
  %1001 = vmatpush2.bf16.msra.mxu0 0
  %1002 = vmatprep.subr.bf16.mxu0 0
  %1003 = vmatpush2.bf16.msra.mxu0 0
  %1004 = vmatprep.subr.bf16.mxu0 0
  %1005 = vmatpush2.bf16.msra.mxu0 0
  %1006 = vmatprep.mubr.bf16.mxu0 0
  %1007 = vmatmul.mubr.bf16.gmra.mxu0 %v972
  %v1008 = vpop.f32.mrf.mxu0
  %v1009 = vadd.f32 0.0, %v1008
  %v1010 = vpop.f32.mrf.mxu0
  %v1011 = vpop.f32.mrf.mxu0
  %v1012 = vpop.f32.mrf.mxu0
  %1013 = vdwg.mxu0
  %1015 = vrot.lane.b32.xlu0 %v966, 64
  %v1016 = vpop.permute.xlu0 %1015
  %v1018 = vsel %vm144, %v1016, 0
  %1020 = vmatprep.subr.bf16.mxu0 0
  %1021 = vmatpush1.bf16.msra.mxu0 0
  %1022 = vmatprep.subr.bf16.mxu0 0
  %1023 = vmatpush1.bf16.msra.mxu0 0
  %1024 = vmatprep.subr.bf16.mxu0 0
  %1025 = vmatpush1.bf16.msra.mxu0 0
  %1026 = vmatprep.subr.bf16.mxu0 0
  %1027 = vmatpush1.bf16.msra.mxu0 0
  %1028 = vmatprep.subr.bf16.mxu0 0
  %1029 = vmatpush1.bf16.msra.mxu0 0
  %1030 = vmatprep.subr.bf16.mxu0 0
  %1031 = vmatpush1.bf16.msra.mxu0 0
  %1032 = vmatprep.subr.bf16.mxu0 0
  %1033 = vmatpush1.bf16.msra.mxu0 %v278
  %1034 = vmatprep.subr.bf16.mxu0 0
  %1035 = vmatpush1.bf16.msra.mxu0 %v277
  %1036 = vmatprep.subr.bf16.mxu0 0
  %1037 = vmatpush2.bf16.msra.mxu0 0
  %1038 = vmatprep.subr.bf16.mxu0 0
  %1039 = vmatpush2.bf16.msra.mxu0 0
  %1040 = vmatprep.subr.bf16.mxu0 0
  %1041 = vmatpush2.bf16.msra.mxu0 0
  %1042 = vmatprep.subr.bf16.mxu0 0
  %1043 = vmatpush2.bf16.msra.mxu0 0
  %1044 = vmatprep.subr.bf16.mxu0 0
  %1045 = vmatpush2.bf16.msra.mxu0 0
  %1046 = vmatprep.subr.bf16.mxu0 0
  %1047 = vmatpush2.bf16.msra.mxu0 0
  %1048 = vmatprep.subr.bf16.mxu0 0
  %1049 = vmatpush2.bf16.msra.mxu0 0
  %1050 = vmatprep.subr.bf16.mxu0 0
  %1051 = vmatpush2.bf16.msra.mxu0 0
  %1052 = vmatprep.mubr.bf16.mxu0 0
  %1053 = vmatmul.mubr.bf16.gmra.mxu0 %v1018
  %v1054 = vpop.f32.mrf.mxu0
  %v1055 = vadd.f32 %v1009, %v1054
  %v1056 = vpop.f32.mrf.mxu0
  %v1057 = vpop.f32.mrf.mxu0
  %v1058 = vpop.f32.mrf.mxu0
  %1059 = vdwg.mxu0
  %v1060 = vadd.f32 %v1055, %v130
  %v1061 = vxor.u32 %v1060, 2147483648
  %v1062 = vmul.f32 %v1061, 1.442695
  %v1063 = vpow.pop %v1062
  %v1064 = vadd.f32 %v1063, 1.0
  %v1065 = vrcp.pop %v1064
  %v1066 = vmul.f32 1.0, %v1065
  %v1067 = vtanh.pop %v1060
  %v1068 = vmul.f32 %v1066, %v894
  %1070 = vrot.lane.b32.xlu0 %v1067, 32
  %v1071 = vpop.permute.xlu0 %1070
  %v1073 = vmul.f32 %v1066, %v1071
  %1075 = vrot.lane.b32.xlu0 %v1073, 32
  %v1076 = vpop.permute.xlu0 %1075
  %v1078 = vadd.f32 %v1068, %v1076
  %v1079 = vtanh.pop %v1078
  %1081 = vrot.lane.b32.xlu0 %v1079, 32
  %v1082 = vpop.permute.xlu0 %1081
  %v1084 = vmul.f32 %v1066, %v1082
  %1085 = vmatprep.subr.bf16.mxu0 0
  %1086 = vmatpush1.bf16.msra.mxu0 0
  %1087 = vmatprep.subr.bf16.mxu0 0
  %1088 = vmatpush1.bf16.msra.mxu0 0
  %1089 = vmatprep.subr.bf16.mxu0 0
  %1090 = vmatpush1.bf16.msra.mxu0 0
  %1091 = vmatprep.subr.bf16.mxu0 0
  %1092 = vmatpush1.bf16.msra.mxu0 0
  %1093 = vmatprep.subr.bf16.mxu0 0
  %1094 = vmatpush1.bf16.msra.mxu0 0
  %1095 = vmatprep.subr.bf16.mxu0 0
  %1096 = vmatpush1.bf16.msra.mxu0 0
  %1097 = vmatprep.subr.bf16.mxu0 0
  %1098 = vmatpush1.bf16.msra.mxu0 %v141
  %1099 = vmatprep.subr.bf16.mxu0 0
  %1100 = vmatpush1.bf16.msra.mxu0 %v140
  %1101 = vmatprep.subr.bf16.mxu0 0
  %1102 = vmatpush2.bf16.msra.mxu0 0
  %1103 = vmatprep.subr.bf16.mxu0 0
  %1104 = vmatpush2.bf16.msra.mxu0 0
  %1105 = vmatprep.subr.bf16.mxu0 0
  %1106 = vmatpush2.bf16.msra.mxu0 0
  %1107 = vmatprep.subr.bf16.mxu0 0
  %1108 = vmatpush2.bf16.msra.mxu0 0
  %1109 = vmatprep.subr.bf16.mxu0 0
  %1110 = vmatpush2.bf16.msra.mxu0 0
  %1111 = vmatprep.subr.bf16.mxu0 0
  %1112 = vmatpush2.bf16.msra.mxu0 0
  %1113 = vmatprep.subr.bf16.mxu0 0
  %1114 = vmatpush2.bf16.msra.mxu0 0
  %1115 = vmatprep.subr.bf16.mxu0 0
  %1116 = vmatpush2.bf16.msra.mxu0 0
  %1117 = vmatprep.mubr.bf16.mxu0 0
  %1118 = vmatmul.mubr.bf16.gmra.mxu0 %v1018
  %v1119 = vpop.f32.mrf.mxu0
  %v1120 = vadd.f32 0.0, %v1119
  %v1121 = vpop.f32.mrf.mxu0
  %v1122 = vpop.f32.mrf.mxu0
  %v1123 = vpop.f32.mrf.mxu0
  %1124 = vdwg.mxu0
  %v1125 = vadd.f32 %v122, %v1120
  %v1126 = vxor.u32 %v1125, 2147483648
  %v1127 = vmul.f32 %v1126, 1.442695
  %v1128 = vpow.pop %v1127
  %v1129 = vadd.f32 %v1128, 1.0
  %v1130 = vrcp.pop %v1129
  %v1131 = vmul.f32 1.0, %v1130
  %v1132 = vtanh.pop %v1125
  %v1133 = vmul.f32 %v1131, %v959
  %1135 = vrot.lane.b32.xlu0 %v1132, 32
  %v1136 = vpop.permute.xlu0 %1135
  %v1138 = vmul.f32 %v1131, %v1136
  %1140 = vrot.lane.b32.xlu0 %v1138, 32
  %v1141 = vpop.permute.xlu0 %1140
  %v1143 = vadd.f32 %v1133, %v1141
  %v1144 = vtanh.pop %v1143
  %1146 = vrot.lane.b32.xlu0 %v1144, 32
  %v1147 = vpop.permute.xlu0 %1146
  %v1149 = vmul.f32 %v1131, %v1147
  %v1150 = vpack.c.bf16 %v1149, %v1149
  %v1151 = vpack.c.bf16 %v1084, %v1084
  %1153 = vrot.lane.b32.xlu0 %v1151, 64
  %v1154 = vpop.permute.xlu0 %1153
  %v1156 = vsel %vm144, %v1154, 0
  %1158 = vmatprep.subr.bf16.mxu0 0
  %1159 = vmatpush1.bf16.msra.mxu0 0
  %1160 = vmatprep.subr.bf16.mxu0 0
  %1161 = vmatpush1.bf16.msra.mxu0 0
  %1162 = vmatprep.subr.bf16.mxu0 0
  %1163 = vmatpush1.bf16.msra.mxu0 0
  %1164 = vmatprep.subr.bf16.mxu0 0
  %1165 = vmatpush1.bf16.msra.mxu0 0
  %1166 = vmatprep.subr.bf16.mxu0 0
  %1167 = vmatpush1.bf16.msra.mxu0 0
  %1168 = vmatprep.subr.bf16.mxu0 0
  %1169 = vmatpush1.bf16.msra.mxu0 0
  %1170 = vmatprep.subr.bf16.mxu0 0
  %1171 = vmatpush1.bf16.msra.mxu0 %v223
  %1172 = vmatprep.subr.bf16.mxu0 0
  %1173 = vmatpush1.bf16.msra.mxu0 %v222
  %1174 = vmatprep.subr.bf16.mxu0 0
  %1175 = vmatpush2.bf16.msra.mxu0 0
  %1176 = vmatprep.subr.bf16.mxu0 0
  %1177 = vmatpush2.bf16.msra.mxu0 0
  %1178 = vmatprep.subr.bf16.mxu0 0
  %1179 = vmatpush2.bf16.msra.mxu0 0
  %1180 = vmatprep.subr.bf16.mxu0 0
  %1181 = vmatpush2.bf16.msra.mxu0 0
  %1182 = vmatprep.subr.bf16.mxu0 0
  %1183 = vmatpush2.bf16.msra.mxu0 0
  %1184 = vmatprep.subr.bf16.mxu0 0
  %1185 = vmatpush2.bf16.msra.mxu0 0
  %1186 = vmatprep.subr.bf16.mxu0 0
  %1187 = vmatpush2.bf16.msra.mxu0 0
  %1188 = vmatprep.subr.bf16.mxu0 0
  %1189 = vmatpush2.bf16.msra.mxu0 0
  %1190 = vmatprep.mubr.bf16.mxu0 0
  %1191 = vmatmul.mubr.bf16.gmra.mxu0 %v1156
  %v1192 = vpop.f32.mrf.mxu0
  %v1193 = vadd.f32 0.0, %v1192
  %v1194 = vpop.f32.mrf.mxu0
  %v1195 = vpop.f32.mrf.mxu0
  %v1196 = vpop.f32.mrf.mxu0
  %1197 = vdwg.mxu0
  %1199 = vrot.lane.b32.xlu0 %v1150, 64
  %v1200 = vpop.permute.xlu0 %1199
  %v1202 = vsel %vm144, %v1200, 0
  %1204 = vmatprep.subr.bf16.mxu0 0
  %1205 = vmatpush1.bf16.msra.mxu0 0
  %1206 = vmatprep.subr.bf16.mxu0 0
  %1207 = vmatpush1.bf16.msra.mxu0 0
  %1208 = vmatprep.subr.bf16.mxu0 0
  %1209 = vmatpush1.bf16.msra.mxu0 0
  %1210 = vmatprep.subr.bf16.mxu0 0
  %1211 = vmatpush1.bf16.msra.mxu0 0
  %1212 = vmatprep.subr.bf16.mxu0 0
  %1213 = vmatpush1.bf16.msra.mxu0 0
  %1214 = vmatprep.subr.bf16.mxu0 0
  %1215 = vmatpush1.bf16.msra.mxu0 0
  %1216 = vmatprep.subr.bf16.mxu0 0
  %1217 = vmatpush1.bf16.msra.mxu0 %v278
  %1218 = vmatprep.subr.bf16.mxu0 0
  %1219 = vmatpush1.bf16.msra.mxu0 %v277
  %1220 = vmatprep.subr.bf16.mxu0 0
  %1221 = vmatpush2.bf16.msra.mxu0 0
  %1222 = vmatprep.subr.bf16.mxu0 0
  %1223 = vmatpush2.bf16.msra.mxu0 0
  %1224 = vmatprep.subr.bf16.mxu0 0
  %1225 = vmatpush2.bf16.msra.mxu0 0
  %1226 = vmatprep.subr.bf16.mxu0 0
  %1227 = vmatpush2.bf16.msra.mxu0 0
  %1228 = vmatprep.subr.bf16.mxu0 0
  %1229 = vmatpush2.bf16.msra.mxu0 0
  %1230 = vmatprep.subr.bf16.mxu0 0
  %1231 = vmatpush2.bf16.msra.mxu0 0
  %1232 = vmatprep.subr.bf16.mxu0 0
  %1233 = vmatpush2.bf16.msra.mxu0 0
  %1234 = vmatprep.subr.bf16.mxu0 0
  %1235 = vmatpush2.bf16.msra.mxu0 0
  %1236 = vmatprep.mubr.bf16.mxu0 0
  %1237 = vmatmul.mubr.bf16.gmra.mxu0 %v1202
  %v1238 = vpop.f32.mrf.mxu0
  %v1239 = vadd.f32 %v1193, %v1238
  %v1240 = vpop.f32.mrf.mxu0
  %v1241 = vpop.f32.mrf.mxu0
  %v1242 = vpop.f32.mrf.mxu0
  %1243 = vdwg.mxu0
  %v1244 = vadd.f32 %v1239, %v130
  %v1245 = vxor.u32 %v1244, 2147483648
  %v1246 = vmul.f32 %v1245, 1.442695
  %v1247 = vpow.pop %v1246
  %v1248 = vadd.f32 %v1247, 1.0
  %v1249 = vrcp.pop %v1248
  %v1250 = vmul.f32 1.0, %v1249
  %v1251 = vtanh.pop %v1244
  %v1252 = vmul.f32 %v1250, %v1078
  %1254 = vrot.lane.b32.xlu0 %v1251, 32
  %v1255 = vpop.permute.xlu0 %1254
  %v1257 = vmul.f32 %v1250, %v1255
  %1259 = vrot.lane.b32.xlu0 %v1257, 32
  %v1260 = vpop.permute.xlu0 %1259
  %v1262 = vadd.f32 %v1252, %v1260
  %v1263 = vtanh.pop %v1262
  %1265 = vrot.lane.b32.xlu0 %v1263, 32
  %v1266 = vpop.permute.xlu0 %1265
  %v1268 = vmul.f32 %v1250, %v1266
  %1269 = vmatprep.subr.bf16.mxu0 0
  %1270 = vmatpush1.bf16.msra.mxu0 0
  %1271 = vmatprep.subr.bf16.mxu0 0
  %1272 = vmatpush1.bf16.msra.mxu0 0
  %1273 = vmatprep.subr.bf16.mxu0 0
  %1274 = vmatpush1.bf16.msra.mxu0 0
  %1275 = vmatprep.subr.bf16.mxu0 0
  %1276 = vmatpush1.bf16.msra.mxu0 0
  %1277 = vmatprep.subr.bf16.mxu0 0
  %1278 = vmatpush1.bf16.msra.mxu0 0
  %1279 = vmatprep.subr.bf16.mxu0 0
  %1280 = vmatpush1.bf16.msra.mxu0 0
  %1281 = vmatprep.subr.bf16.mxu0 0
  %1282 = vmatpush1.bf16.msra.mxu0 %v141
  %1283 = vmatprep.subr.bf16.mxu0 0
  %1284 = vmatpush1.bf16.msra.mxu0 %v140
  %1285 = vmatprep.subr.bf16.mxu0 0
  %1286 = vmatpush2.bf16.msra.mxu0 0
  %1287 = vmatprep.subr.bf16.mxu0 0
  %1288 = vmatpush2.bf16.msra.mxu0 0
  %1289 = vmatprep.subr.bf16.mxu0 0
  %1290 = vmatpush2.bf16.msra.mxu0 0
  %1291 = vmatprep.subr.bf16.mxu0 0
  %1292 = vmatpush2.bf16.msra.mxu0 0
  %1293 = vmatprep.subr.bf16.mxu0 0
  %1294 = vmatpush2.bf16.msra.mxu0 0
  %1295 = vmatprep.subr.bf16.mxu0 0
  %1296 = vmatpush2.bf16.msra.mxu0 0
  %1297 = vmatprep.subr.bf16.mxu0 0
  %1298 = vmatpush2.bf16.msra.mxu0 0
  %1299 = vmatprep.subr.bf16.mxu0 0
  %1300 = vmatpush2.bf16.msra.mxu0 0
  %1301 = vmatprep.mubr.bf16.mxu0 0
  %1302 = vmatmul.mubr.bf16.gmra.mxu0 %v1202
  %v1303 = vpop.f32.mrf.mxu0
  %v1304 = vadd.f32 0.0, %v1303
  %v1305 = vpop.f32.mrf.mxu0
  %v1306 = vpop.f32.mrf.mxu0
  %v1307 = vpop.f32.mrf.mxu0
  %1308 = vdwg.mxu0
  %v1309 = vadd.f32 %v123, %v1304
  %v1310 = vxor.u32 %v1309, 2147483648
  %v1311 = vmul.f32 %v1310, 1.442695
  %v1312 = vpow.pop %v1311
  %v1313 = vadd.f32 %v1312, 1.0
  %v1314 = vrcp.pop %v1313
  %v1315 = vmul.f32 1.0, %v1314
  %v1316 = vtanh.pop %v1309
  %v1317 = vmul.f32 %v1315, %v1143
  %1319 = vrot.lane.b32.xlu0 %v1316, 32
  %v1320 = vpop.permute.xlu0 %1319
  %v1322 = vmul.f32 %v1315, %v1320
  %1324 = vrot.lane.b32.xlu0 %v1322, 32
  %v1325 = vpop.permute.xlu0 %1324
  %v1327 = vadd.f32 %v1317, %v1325
  %v1328 = vtanh.pop %v1327
  %1330 = vrot.lane.b32.xlu0 %v1328, 32
  %v1331 = vpop.permute.xlu0 %1330
  %v1333 = vmul.f32 %v1315, %v1331
  %v1334 = vpack.c.bf16 %v1333, %v1333
  %v1335 = vpack.c.bf16 %v1268, %v1268
  %1337 = vrot.lane.b32.xlu0 %v1335, 64
  %v1338 = vpop.permute.xlu0 %1337
  %v1340 = vsel %vm144, %v1338, 0
  %1342 = vmatprep.subr.bf16.mxu0 0
  %1343 = vmatpush1.bf16.msra.mxu0 0
  %1344 = vmatprep.subr.bf16.mxu0 0
  %1345 = vmatpush1.bf16.msra.mxu0 0
  %1346 = vmatprep.subr.bf16.mxu0 0
  %1347 = vmatpush1.bf16.msra.mxu0 0
  %1348 = vmatprep.subr.bf16.mxu0 0
  %1349 = vmatpush1.bf16.msra.mxu0 0
  %1350 = vmatprep.subr.bf16.mxu0 0
  %1351 = vmatpush1.bf16.msra.mxu0 0
  %1352 = vmatprep.subr.bf16.mxu0 0
  %1353 = vmatpush1.bf16.msra.mxu0 0
  %1354 = vmatprep.subr.bf16.mxu0 0
  %1355 = vmatpush1.bf16.msra.mxu0 %v223
  %1356 = vmatprep.subr.bf16.mxu0 0
  %1357 = vmatpush1.bf16.msra.mxu0 %v222
  %1358 = vmatprep.subr.bf16.mxu0 0
  %1359 = vmatpush2.bf16.msra.mxu0 0
  %1360 = vmatprep.subr.bf16.mxu0 0
  %1361 = vmatpush2.bf16.msra.mxu0 0
  %1362 = vmatprep.subr.bf16.mxu0 0
  %1363 = vmatpush2.bf16.msra.mxu0 0
  %1364 = vmatprep.subr.bf16.mxu0 0
  %1365 = vmatpush2.bf16.msra.mxu0 0
  %1366 = vmatprep.subr.bf16.mxu0 0
  %1367 = vmatpush2.bf16.msra.mxu0 0
  %1368 = vmatprep.subr.bf16.mxu0 0
  %1369 = vmatpush2.bf16.msra.mxu0 0
  %1370 = vmatprep.subr.bf16.mxu0 0
  %1371 = vmatpush2.bf16.msra.mxu0 0
  %1372 = vmatprep.subr.bf16.mxu0 0
  %1373 = vmatpush2.bf16.msra.mxu0 0
  %1374 = vmatprep.mubr.bf16.mxu0 0
  %1375 = vmatmul.mubr.bf16.gmra.mxu0 %v1340
  %v1376 = vpop.f32.mrf.mxu0
  %v1377 = vadd.f32 0.0, %v1376
  %v1378 = vpop.f32.mrf.mxu0
  %v1379 = vpop.f32.mrf.mxu0
  %v1380 = vpop.f32.mrf.mxu0
  %1381 = vdwg.mxu0
  %1383 = vrot.lane.b32.xlu0 %v1334, 64
  %v1384 = vpop.permute.xlu0 %1383
  %v1386 = vsel %vm144, %v1384, 0
  %1388 = vmatprep.subr.bf16.mxu0 0
  %1389 = vmatpush1.bf16.msra.mxu0 0
  %1390 = vmatprep.subr.bf16.mxu0 0
  %1391 = vmatpush1.bf16.msra.mxu0 0
  %1392 = vmatprep.subr.bf16.mxu0 0
  %1393 = vmatpush1.bf16.msra.mxu0 0
  %1394 = vmatprep.subr.bf16.mxu0 0
  %1395 = vmatpush1.bf16.msra.mxu0 0
  %1396 = vmatprep.subr.bf16.mxu0 0
  %1397 = vmatpush1.bf16.msra.mxu0 0
  %1398 = vmatprep.subr.bf16.mxu0 0
  %1399 = vmatpush1.bf16.msra.mxu0 0
  %1400 = vmatprep.subr.bf16.mxu0 0
  %1401 = vmatpush1.bf16.msra.mxu0 %v278
  %1402 = vmatprep.subr.bf16.mxu0 0
  %1403 = vmatpush1.bf16.msra.mxu0 %v277
  %1404 = vmatprep.subr.bf16.mxu0 0
  %1405 = vmatpush2.bf16.msra.mxu0 0
  %1406 = vmatprep.subr.bf16.mxu0 0
  %1407 = vmatpush2.bf16.msra.mxu0 0
  %1408 = vmatprep.subr.bf16.mxu0 0
  %1409 = vmatpush2.bf16.msra.mxu0 0
  %1410 = vmatprep.subr.bf16.mxu0 0
  %1411 = vmatpush2.bf16.msra.mxu0 0
  %1412 = vmatprep.subr.bf16.mxu0 0
  %1413 = vmatpush2.bf16.msra.mxu0 0
  %1414 = vmatprep.subr.bf16.mxu0 0
  %1415 = vmatpush2.bf16.msra.mxu0 0
  %1416 = vmatprep.subr.bf16.mxu0 0
  %1417 = vmatpush2.bf16.msra.mxu0 0
  %1418 = vmatprep.subr.bf16.mxu0 0
  %1419 = vmatpush2.bf16.msra.mxu0 0
  %1420 = vmatprep.mubr.bf16.mxu0 0
  %1421 = vmatmul.mubr.bf16.gmra.mxu0 %v1386
  %v1422 = vpop.f32.mrf.mxu0
  %v1423 = vadd.f32 %v1377, %v1422
  %v1424 = vpop.f32.mrf.mxu0
  %v1425 = vpop.f32.mrf.mxu0
  %v1426 = vpop.f32.mrf.mxu0
  %1427 = vdwg.mxu0
  %v1428 = vadd.f32 %v1423, %v130
  %v1429 = vxor.u32 %v1428, 2147483648
  %v1430 = vmul.f32 %v1429, 1.442695
  %v1431 = vpow.pop %v1430
  %v1432 = vadd.f32 %v1431, 1.0
  %v1433 = vrcp.pop %v1432
  %v1434 = vmul.f32 1.0, %v1433
  %v1435 = vtanh.pop %v1428
  %v1436 = vmul.f32 %v1434, %v1262
  %1438 = vrot.lane.b32.xlu0 %v1435, 32
  %v1439 = vpop.permute.xlu0 %1438
  %v1441 = vmul.f32 %v1434, %v1439
  %1443 = vrot.lane.b32.xlu0 %v1441, 32
  %v1444 = vpop.permute.xlu0 %1443
  %v1446 = vadd.f32 %v1436, %v1444
  %v1447 = vtanh.pop %v1446
  %1449 = vrot.lane.b32.xlu0 %v1447, 32
  %v1450 = vpop.permute.xlu0 %1449
  %v1452 = vmul.f32 %v1434, %v1450
  %1453 = vmatprep.subr.bf16.mxu0 0
  %1454 = vmatpush1.bf16.msra.mxu0 0
  %1455 = vmatprep.subr.bf16.mxu0 0
  %1456 = vmatpush1.bf16.msra.mxu0 0
  %1457 = vmatprep.subr.bf16.mxu0 0
  %1458 = vmatpush1.bf16.msra.mxu0 0
  %1459 = vmatprep.subr.bf16.mxu0 0
  %1460 = vmatpush1.bf16.msra.mxu0 0
  %1461 = vmatprep.subr.bf16.mxu0 0
  %1462 = vmatpush1.bf16.msra.mxu0 0
  %1463 = vmatprep.subr.bf16.mxu0 0
  %1464 = vmatpush1.bf16.msra.mxu0 0
  %1465 = vmatprep.subr.bf16.mxu0 0
  %1466 = vmatpush1.bf16.msra.mxu0 %v141
  %1467 = vmatprep.subr.bf16.mxu0 0
  %1468 = vmatpush1.bf16.msra.mxu0 %v140
  %1469 = vmatprep.subr.bf16.mxu0 0
  %1470 = vmatpush2.bf16.msra.mxu0 0
  %1471 = vmatprep.subr.bf16.mxu0 0
  %1472 = vmatpush2.bf16.msra.mxu0 0
  %1473 = vmatprep.subr.bf16.mxu0 0
  %1474 = vmatpush2.bf16.msra.mxu0 0
  %1475 = vmatprep.subr.bf16.mxu0 0
  %1476 = vmatpush2.bf16.msra.mxu0 0
  %1477 = vmatprep.subr.bf16.mxu0 0
  %1478 = vmatpush2.bf16.msra.mxu0 0
  %1479 = vmatprep.subr.bf16.mxu0 0
  %1480 = vmatpush2.bf16.msra.mxu0 0
  %1481 = vmatprep.subr.bf16.mxu0 0
  %1482 = vmatpush2.bf16.msra.mxu0 0
  %1483 = vmatprep.subr.bf16.mxu0 0
  %1484 = vmatpush2.bf16.msra.mxu0 0
  %1485 = vmatprep.mubr.bf16.mxu0 0
  %1486 = vmatmul.mubr.bf16.gmra.mxu0 %v1386
  %v1487 = vpop.f32.mrf.mxu0
  %v1488 = vadd.f32 0.0, %v1487
  %v1489 = vpop.f32.mrf.mxu0
  %v1490 = vpop.f32.mrf.mxu0
  %v1491 = vpop.f32.mrf.mxu0
  %1492 = vdwg.mxu0
  %v1493 = vadd.f32 %v124, %v1488
  %v1494 = vxor.u32 %v1493, 2147483648
  %v1495 = vmul.f32 %v1494, 1.442695
  %v1496 = vpow.pop %v1495
  %v1497 = vadd.f32 %v1496, 1.0
  %v1498 = vrcp.pop %v1497
  %v1499 = vmul.f32 1.0, %v1498
  %v1500 = vtanh.pop %v1493
  %v1501 = vmul.f32 %v1499, %v1327
  %1503 = vrot.lane.b32.xlu0 %v1500, 32
  %v1504 = vpop.permute.xlu0 %1503
  %v1506 = vmul.f32 %v1499, %v1504
  %1508 = vrot.lane.b32.xlu0 %v1506, 32
  %v1509 = vpop.permute.xlu0 %1508
  %v1511 = vadd.f32 %v1501, %v1509
  %v1512 = vtanh.pop %v1511
  %1514 = vrot.lane.b32.xlu0 %v1512, 32
  %v1515 = vpop.permute.xlu0 %1514
  %v1517 = vmul.f32 %v1499, %v1515
  %v1518 = vpack.c.bf16 %v1517, %v1517
  %v1519 = vpack.c.bf16 %v1452, %v1452
  %1521 = vrot.lane.b32.xlu0 %v1519, 64
  %v1522 = vpop.permute.xlu0 %1521
  %v1524 = vsel %vm144, %v1522, 0
  %1526 = vmatprep.subr.bf16.mxu0 0
  %1527 = vmatpush1.bf16.msra.mxu0 0
  %1528 = vmatprep.subr.bf16.mxu0 0
  %1529 = vmatpush1.bf16.msra.mxu0 0
  %1530 = vmatprep.subr.bf16.mxu0 0
  %1531 = vmatpush1.bf16.msra.mxu0 0
  %1532 = vmatprep.subr.bf16.mxu0 0
  %1533 = vmatpush1.bf16.msra.mxu0 0
  %1534 = vmatprep.subr.bf16.mxu0 0
  %1535 = vmatpush1.bf16.msra.mxu0 0
  %1536 = vmatprep.subr.bf16.mxu0 0
  %1537 = vmatpush1.bf16.msra.mxu0 0
  %1538 = vmatprep.subr.bf16.mxu0 0
  %1539 = vmatpush1.bf16.msra.mxu0 %v223
  %1540 = vmatprep.subr.bf16.mxu0 0
  %1541 = vmatpush1.bf16.msra.mxu0 %v222
  %1542 = vmatprep.subr.bf16.mxu0 0
  %1543 = vmatpush2.bf16.msra.mxu0 0
  %1544 = vmatprep.subr.bf16.mxu0 0
  %1545 = vmatpush2.bf16.msra.mxu0 0
  %1546 = vmatprep.subr.bf16.mxu0 0
  %1547 = vmatpush2.bf16.msra.mxu0 0
  %1548 = vmatprep.subr.bf16.mxu0 0
  %1549 = vmatpush2.bf16.msra.mxu0 0
  %1550 = vmatprep.subr.bf16.mxu0 0
  %1551 = vmatpush2.bf16.msra.mxu0 0
  %1552 = vmatprep.subr.bf16.mxu0 0
  %1553 = vmatpush2.bf16.msra.mxu0 0
  %1554 = vmatprep.subr.bf16.mxu0 0
  %1555 = vmatpush2.bf16.msra.mxu0 0
  %1556 = vmatprep.subr.bf16.mxu0 0
  %1557 = vmatpush2.bf16.msra.mxu0 0
  %1558 = vmatprep.mubr.bf16.mxu0 0
  %1559 = vmatmul.mubr.bf16.gmra.mxu0 %v1524
  %v1560 = vpop.f32.mrf.mxu0
  %v1561 = vadd.f32 0.0, %v1560
  %v1562 = vpop.f32.mrf.mxu0
  %v1563 = vpop.f32.mrf.mxu0
  %v1564 = vpop.f32.mrf.mxu0
  %1565 = vdwg.mxu0
  %1567 = vrot.lane.b32.xlu0 %v1518, 64
  %v1568 = vpop.permute.xlu0 %1567
  %v1570 = vsel %vm144, %v1568, 0
  %1572 = vmatprep.subr.bf16.mxu0 0
  %1573 = vmatpush1.bf16.msra.mxu0 0
  %1574 = vmatprep.subr.bf16.mxu0 0
  %1575 = vmatpush1.bf16.msra.mxu0 0
  %1576 = vmatprep.subr.bf16.mxu0 0
  %1577 = vmatpush1.bf16.msra.mxu0 0
  %1578 = vmatprep.subr.bf16.mxu0 0
  %1579 = vmatpush1.bf16.msra.mxu0 0
  %1580 = vmatprep.subr.bf16.mxu0 0
  %1581 = vmatpush1.bf16.msra.mxu0 0
  %1582 = vmatprep.subr.bf16.mxu0 0
  %1583 = vmatpush1.bf16.msra.mxu0 0
  %1584 = vmatprep.subr.bf16.mxu0 0
  %1585 = vmatpush1.bf16.msra.mxu0 %v278
  %1586 = vmatprep.subr.bf16.mxu0 0
  %1587 = vmatpush1.bf16.msra.mxu0 %v277
  %1588 = vmatprep.subr.bf16.mxu0 0
  %1589 = vmatpush2.bf16.msra.mxu0 0
  %1590 = vmatprep.subr.bf16.mxu0 0
  %1591 = vmatpush2.bf16.msra.mxu0 0
  %1592 = vmatprep.subr.bf16.mxu0 0
  %1593 = vmatpush2.bf16.msra.mxu0 0
  %1594 = vmatprep.subr.bf16.mxu0 0
  %1595 = vmatpush2.bf16.msra.mxu0 0
  %1596 = vmatprep.subr.bf16.mxu0 0
  %1597 = vmatpush2.bf16.msra.mxu0 0
  %1598 = vmatprep.subr.bf16.mxu0 0
  %1599 = vmatpush2.bf16.msra.mxu0 0
  %1600 = vmatprep.subr.bf16.mxu0 0
  %1601 = vmatpush2.bf16.msra.mxu0 0
  %1602 = vmatprep.subr.bf16.mxu0 0
  %1603 = vmatpush2.bf16.msra.mxu0 0
  %1604 = vmatprep.mubr.bf16.mxu0 0
  %1605 = vmatmul.mubr.bf16.gmra.mxu0 %v1570
  %v1606 = vpop.f32.mrf.mxu0
  %v1607 = vadd.f32 %v1561, %v1606
  %v1608 = vpop.f32.mrf.mxu0
  %v1609 = vpop.f32.mrf.mxu0
  %v1610 = vpop.f32.mrf.mxu0
  %1611 = vdwg.mxu0
  %v1612 = vadd.f32 %v1607, %v130
  %v1613 = vxor.u32 %v1612, 2147483648
  %v1614 = vmul.f32 %v1613, 1.442695
  %v1615 = vpow.pop %v1614
  %v1616 = vadd.f32 %v1615, 1.0
  %v1617 = vrcp.pop %v1616
  %v1618 = vmul.f32 1.0, %v1617
  %v1619 = vtanh.pop %v1612
  %v1620 = vmul.f32 %v1618, %v1446
  %1622 = vrot.lane.b32.xlu0 %v1619, 32
  %v1623 = vpop.permute.xlu0 %1622
  %v1625 = vmul.f32 %v1618, %v1623
  %1627 = vrot.lane.b32.xlu0 %v1625, 32
  %v1628 = vpop.permute.xlu0 %1627
  %v1630 = vadd.f32 %v1620, %v1628
  %v1631 = vtanh.pop %v1630
  %1633 = vrot.lane.b32.xlu0 %v1631, 32
  %v1634 = vpop.permute.xlu0 %1633
  %v1636 = vmul.f32 %v1618, %v1634
  %v1637 = vld [vmem:[%s7] sm:$0x1]
  %v1639 = vlaneseq
  %v1640 = vshrl.u32 %v1639, 7
  %v1641 = vsub.s32 0, %v1640
  %v1642 = vrot.slane %v1637, %v1641
  %1643 = vrot.lane.b32.xlu0 %v1642, 64
  %v1644 = vpop.permute.xlu0 %1643
  %v1646 = vmul.f32 %v1636, %v1644
  %1648 = vrot.lane.b32.xlu0 %v1646, 64
  %v1649 = vpop.permute.xlu0 %1648
  %v1651 = vsel %vm144, %v1649, 0.0
  %1652 = vadd.xlane.f32.xlu0 %v1651
  %v1653 = vpop.xlane.xlu0 %1652
  %v1654 = vld [vmem:[#allocation2] sm:$0x1]
  %v1656 = vlaneseq
  %v1657 = vshrl.u32 %v1656, 7
  %v1658 = vsub.s32 0, %v1657
  %v1659 = vrot.slane %v1654, %v1658
  %v1661 = vadd.f32 %v1653, %v1659
  %vm1662 = vcmask 7168
  %1663 = vst.msk [vmem:[%s9] sm:$0xff] %vm1662, %v1661
  // Predicated region
  $region38: #{tpu_custom_call.1} parent=0 // pred_check
    _
  $region39: #{tpu_custom_call.1} parent=0 // pred_check_branch
    %1665 = sbr.rel (0) target = $region41
  $region40: #{tpu_custom_call.1} parent=0 // pred_region
    _
  $region41: #{tpu_custom_call.1} parent=0 // pred_fallthru
    _
  // Predicated region
  $region42: #{tpu_custom_call.1} parent=0 // pred_check
    _
  $region43: #{tpu_custom_call.1} parent=0 // pred_check_branch
    %1667 = sbr.rel (0) target = $region45
  $region44: #{tpu_custom_call.1} parent=0 // pred_region
    _
  $region45: #{tpu_custom_call.1} parent=0 // pred_fallthru
    _

</llo_original>
